<compile_context>
chip_gen: v6e
topology: v6e:2x2x1
jax: 0.10.0
libtpu: 0.0.40
codegen_flags: <defaults>
</compile_context>

<pallas_src>
import functools
import math

import jax
import jax.numpy as jnp
from jax.experimental import pallas as pl
from jax.experimental.pallas import tpu as pltpu


# ------------------------------ kernel ------------------------------------- #


def _softmax_last(x):
    m = jnp.max(x, axis=-1, keepdims=True)
    e = jnp.exp(x - m)
    return e * pl.reciprocal(jnp.sum(e, axis=-1, keepdims=True), approx=True)


def _mha_kernel(coef_ref, xq_ref, xk_ref, xv_ref, w_ref, b_ref,
                rel_ref, ts_ref, mask_ref,
                out_ref, attn_ref, k_scr, v_scr, *, num_heads):
    _, TQ, D = xq_ref.shape
    S = k_scr.shape[0]
    H = num_heads
    d = D // H
    mxu_dtype = w_ref.dtype

    qi = pl.program_id(1)

    a_mix = coef_ref[0]            # (1 - l1) * (1 - l2)
    c_rel = coef_ref[1]            # (1 - l2) * l1
    c_time = coef_ref[2]           # l2

    # --- K/V projections: once per batch row, cached in VMEM scratch ---------
    @pl.when(qi == 0)
    def _():
        kp = jnp.dot(xk_ref[0], w_ref[1], preferred_element_type=jnp.float32) + b_ref[1]
        vp = jnp.dot(xv_ref[0], w_ref[2], preferred_element_type=jnp.float32) + b_ref[2]
        k_scr[...] = kp.astype(k_scr.dtype)
        v_scr[...] = vp.astype(v_scr.dtype)

    # --- Q projection for this row tile (lane-dense (TQ, D)) -----------------
    q = (jnp.dot(xq_ref[0], w_ref[0], preferred_element_type=jnp.float32)
         + b_ref[0]).astype(mxu_dtype)                 # (TQ, D)
    k_all = k_scr[...]                                 # (S, D)
    v_all = v_scr[...]                                 # (S, D)

    # --- fused mask/scale biases, computed once per tile ---------------------
    mask_f = mask_ref[0].astype(jnp.float32)           # (TQ, S), 1.0 = masked
    neg_big = mask_f * jnp.float32(-1e32)
    neg_small = mask_f * jnp.float32(-1e5)

    # head-invariant rel / time attention, computed once on (TQ, S)
    rel_attn = _softmax_last(rel_ref[0] + neg_small)
    time_attn = _softmax_last(jnp.exp(-jnp.abs(ts_ref[0])) + neg_small)

    # row-0 zeroing folded into the mix coefficients (no (H,S,S) iota/select)
    row0 = (jax.lax.broadcasted_iota(jnp.int32, (TQ, 1), 0) + qi * TQ) == 0
    a_vec = jnp.where(row0, jnp.float32(0.0), a_mix)                    # (TQ, 1)
    c_mix = jnp.where(row0, jnp.float32(0.0),
                      c_rel * rel_attn + c_time * time_attn)            # (TQ, S)

    inv_sqrt_d = jnp.float32(1.0 / math.sqrt(d))

    # --- per-head attention on static lane slices (no head-split transpose) --
    out_cols = []
    for h in range(H):                                 # static unroll, H small
        sl = slice(h * d, (h + 1) * d)
        q_h = q[:, sl]                                 # (TQ, d)
        k_h = k_all[:, sl]                             # (S, d)
        v_h = v_all[:, sl]                             # (S, d)
        s_h = jax.lax.dot_general(                     # q_h @ k_h.T (no transpose op)
            q_h, k_h, (((1,), (1,)), ((), ())),
            preferred_element_type=jnp.float32)        # (TQ, S)
        p_h = _softmax_last(s_h * inv_sqrt_d + neg_big)
        m_h = a_vec * p_h + c_mix                      # mixed attn, row 0 zeroed
        attn_ref[0, h] = m_h.astype(attn_ref.dtype)
        out_cols.append(jnp.dot(m_h.astype(mxu_dtype), v_h,
                                preferred_element_type=jnp.float32))   # (TQ, d)

    # merge heads once and store lane-dense (TQ, D)
    out_ref[0] = jnp.concatenate(out_cols, axis=-1).astype(out_ref.dtype)


# ------------------------------ wrapper ------------------------------------ #


def multi_headed_attention(query, key, value, rel, l1, l2, timestamp, mask,
                           params, num_heads, *,
                           mxu_dtype=jnp.bfloat16,
                           attn_dtype=jnp.bfloat16,
                           tq=128,
                           vmem_limit_bytes=48 * 1024 * 1024):
    """Pallas implementation of MultiHeadedAttention.forward (eval mode).

    query/key/value: (B, S, D); rel, timestamp: (B, S, S); mask: (B, S, S) bool.
    Returns (out (B, S, D) f32, prob_attn (B, H, S, S) in attn_dtype).
    `tq` should be a multiple of 32 (int8 mask sublane tile) when tq < S.
    """
    B, S, D = query.shape
    H = num_heads
    assert D % H == 0

    tq = min(tq, S)                     # keep the key dim full; tile query rows
    nq = -(-S // tq)                    # cdiv
    S_pad = nq * tq

    # torch weights are (out, in); transpose to (in, out) so kernel does x @ W.
    w_all = jnp.stack([params["wq"].T, params["wk"].T,
                       params["wv"].T]).astype(mxu_dtype)                # (3, D, D)
    b_all = jnp.stack([params["bq"], params["bk"],
                       params["bv"]])[:, None, :].astype(jnp.float32)    # (3, 1, D)
    coef = jnp.array([(1.0 - l1) * (1.0 - l2), (1.0 - l2) * l1, l2],
                     jnp.float32)

    xq = query.astype(mxu_dtype)        # bf16 streaming when mxu_dtype=bf16
    xk = key.astype(mxu_dtype)
    xv = value.astype(mxu_dtype)
    rel_f = rel.astype(jnp.float32)
    ts_f = timestamp.astype(jnp.float32)
    mask_i8 = mask.astype(jnp.int8)     # 4x less DMA than an f32 mask

    if S_pad != S:
        p = S_pad - S
        xq = jnp.pad(xq, ((0, 0), (0, p), (0, 0)))
        xk = jnp.pad(xk, ((0, 0), (0, p), (0, 0)))
        xv = jnp.pad(xv, ((0, 0), (0, p), (0, 0)))
        rel_f = jnp.pad(rel_f, ((0, 0), (0, p), (0, p)))
        ts_f = jnp.pad(ts_f, ((0, 0), (0, p), (0, p)))
        mask_i8 = jnp.pad(mask_i8, ((0, 0), (0, p), (0, p)), constant_values=1)

    xq_spec = pl.BlockSpec((1, tq, D), lambda b, i: (b, i, 0))
    xkv_spec = pl.BlockSpec((1, S_pad, D), lambda b, i: (b, 0, 0))
    w_spec = pl.BlockSpec((3, D, D), lambda b, i: (0, 0, 0))      # grid-invariant
    b_spec = pl.BlockSpec((3, 1, D), lambda b, i: (0, 0, 0))      # grid-invariant
    ss_spec = pl.BlockSpec((1, tq, S_pad), lambda b, i: (b, i, 0))
    smem_spec = pl.BlockSpec(memory_space=pltpu.MemorySpace.SMEM)
    out_spec = pl.BlockSpec((1, tq, D), lambda b, i: (b, i, 0))
    attn_spec = pl.BlockSpec((1, H, tq, S_pad), lambda b, i: (b, 0, i, 0))

    kernel = functools.partial(_mha_kernel, num_heads=H)

    out, attn = pl.pallas_call(
        kernel,
        grid=(B, nq),
        in_specs=[smem_spec, xq_spec, xkv_spec, xkv_spec, w_spec, b_spec,
                  ss_spec, ss_spec, ss_spec],
        out_specs=(out_spec, attn_spec),
        out_shape=(jax.ShapeDtypeStruct((B, S_pad, D), jnp.float32),
                   jax.ShapeDtypeStruct((B, H, S_pad, S_pad), attn_dtype)),
        scratch_shapes=[pltpu.VMEM((S_pad, D), mxu_dtype),   # cached K projection
                        pltpu.VMEM((S_pad, D), mxu_dtype)],  # cached V projection
        compiler_params=pltpu.CompilerParams(
            # K/V projections are cached in scratch across the row-tile axis,
            # so it must stay "arbitrary"; batch is "parallel" (megacore/v7x).
            dimension_semantics=("parallel", "arbitrary"),
            vmem_limit_bytes=vmem_limit_bytes),
    )(coef, xq, xk, xv, w_all, b_all, rel_f, ts_f, mask_i8)

    if S_pad != S:
        out = out[:, :S, :]
        attn = attn[:, :, :S, :S]
    return out, attn


# --------------------------- pure-JAX reference ----------------------------- #


def _reference(query, key, value, rel, l1, l2, timestamp, mask, params, num_heads):
    B, S, D = query.shape
    H = num_heads
    d = D // H

    def lin(x, w, b):
        return x @ w.T + b

    def split_heads(x):
        return x.reshape(B, S, H, d).transpose(0, 2, 1, 3)

    q = split_heads(lin(query, params["wq"], params["bq"]))
    k = split_heads(lin(key, params["wk"], params["bk"]))
    v = split_heads(lin(value, params["wv"], params["bv"]))

    m = mask[:, None, :, :]
    scores = jnp.einsum('bhqd,bhkd->bhqk', q, k) / math.sqrt(d)
    scores = jnp.where(m, -1e32, scores)
    prob = jax.nn.softmax(scores, axis=-1)
    rel_b = jnp.broadcast_to(rel[:, None], (B, H, S, S))
    rel_attn = jax.nn.softmax(jnp.where(m, -100000.0, rel_b), axis=-1)
    t = jnp.exp(-jnp.abs(timestamp.astype(jnp.float32)))[:, None]
    t_b = jnp.broadcast_to(t, (B, H, S, S))
    time_attn = jax.nn.softmax(jnp.where(m, -100000.0, t_b), axis=-1)

    zero_row = jnp.zeros((B, H, 1, S), jnp.float32)
    prob = jnp.concatenate([zero_row, prob[:, :, 1:, :]], axis=2)
    rel_attn = jnp.concatenate([zero_row, rel_attn[:, :, 1:, :]], axis=2)
    time_attn = jnp.concatenate([zero_row, time_attn[:, :, 1:, :]], axis=2)
    prob = (1 - l1) * prob + l1 * rel_attn
    prob = (1 - l2) * prob + l2 * time_attn
    out = jnp.einsum('bhqk,bhkd->bhqd', prob, v)
    out = out.transpose(0, 2, 1, 3).reshape(B, S, D)
    return out, prob


# --------------------------------- main ------------------------------------- #


def _make_inputs(B, S, D, seed=0):
    key = jax.random.PRNGKey(seed)
    ks = jax.random.split(key, 12)
    bound = 1.0 / math.sqrt(D)
    params = {
        "wq": jax.random.uniform(ks[0], (D, D), jnp.float32, -bound, bound),
        "bq": jax.random.uniform(ks[1], (D,), jnp.float32, -bound, bound),
        "wk": jax.random.uniform(ks[2], (D, D), jnp.float32, -bound, bound),
        "bk": jax.random.uniform(ks[3], (D,), jnp.float32, -bound, bound),
        "wv": jax.random.uniform(ks[4], (D, D), jnp.float32, -bound, bound),
        "bv": jax.random.uniform(ks[5], (D,), jnp.float32, -bound, bound),
    }
    query = jax.random.normal(ks[6], (B, S, D), jnp.float32)
    key_in = jax.random.normal(ks[7], (B, S, D), jnp.float32)
    value = jax.random.normal(ks[8], (B, S, D), jnp.float32)
    rel = jax.random.uniform(ks[9], (B, S, S), jnp.float32)
    timestamp = jax.random.uniform(ks[10], (B, S, S), jnp.float32, 0.0, 10.0)
    # causal mask: True (masked) above the diagonal, like the rkt usage
    mask = jnp.broadcast_to(jnp.triu(jnp.ones((S, S), bool), k=1), (B, S, S))
    return params, query, key_in, value, rel, timestamp, mask


if __name__ == "__main__":
    H = 4
    l1, l2 = 0.5, 0.3

    # ---- config A: tiny single-tile, f32 everywhere (exactness check) -------
    B, S, D = 2, 8, 32
    params, q, k, v, rel, ts, mask = _make_inputs(B, S, D, seed=0)
    ref_out, ref_attn = _reference(q, k, v, rel, l1, l2, ts, mask, params, H)
    out, attn = multi_headed_attention(
        q, k, v, rel, l1, l2, ts, mask, params, H,
        mxu_dtype=jnp.float32, attn_dtype=jnp.float32)
    out = jax.block_until_ready(out)
    attn = jax.block_until_ready(attn)
    assert out.shape == (B, S, D) and attn.shape == (B, H, S, S)
    assert jnp.allclose(out, ref_out, rtol=2e-3, atol=2e-3)
    assert jnp.allclose(attn, ref_attn, rtol=2e-3, atol=2e-3)

    # ---- config B: multi-tile row grid + padding (S=50 -> 64), f32 MXU ------
    B, S, D = 2, 50, 32
    params, q, k, v, rel, ts, mask = _make_inputs(B, S, D, seed=1)
    ref_out, ref_attn = _reference(q, k, v, rel, l1, l2, ts, mask, params, H)
    out, attn = multi_headed_attention(
        q, k, v, rel, l1, l2, ts, mask, params, H,
        mxu_dtype=jnp.float32, attn_dtype=jnp.float32, tq=32)
    out = jax.block_until_ready(out)
    attn = jax.block_until_ready(attn)
    assert out.shape == (B, S, D) and attn.shape == (B, H, S, S)
    assert jnp.allclose(out, ref_out, rtol=2e-3, atol=2e-3)
    assert jnp.allclose(attn, ref_attn, rtol=2e-3, atol=2e-3)

    # ---- config C: same inputs, default bf16 MXU operands + bf16 attn out ---
    out_bf, attn_bf = multi_headed_attention(
        q, k, v, rel, l1, l2, ts, mask, params, H, tq=32)
    out_bf = jax.block_until_ready(out_bf)
    attn_bf = jax.block_until_ready(attn_bf)
    assert jnp.allclose(out_bf, ref_out, rtol=3e-2, atol=3e-2)
    assert jnp.allclose(attn_bf.astype(jnp.float32), ref_attn, rtol=3e-2, atol=3e-2)

    print("KERNEL_OK")
</pallas_src>

<mosaic_0001>
module attributes {stable_mosaic.version = 11 : i64} {
  func.func @_mha_kernel(%arg0: i32, %arg1: i32, %arg2: memref<3xf32, #tpu.memory_space<smem>>, %arg3: memref<1x8x32xf32, #tpu.memory_space<vmem>>, %arg4: memref<1x8x32xf32, #tpu.memory_space<vmem>>, %arg5: memref<1x8x32xf32, #tpu.memory_space<vmem>>, %arg6: memref<3x32x32xf32, #tpu.memory_space<vmem>>, %arg7: memref<3x1x32xf32, #tpu.memory_space<vmem>>, %arg8: memref<1x8x8xf32, #tpu.memory_space<vmem>>, %arg9: memref<1x8x8xf32, #tpu.memory_space<vmem>>, %arg10: memref<1x8x8xi8, #tpu.memory_space<vmem>>, %arg11: memref<1x8x32xf32, #tpu.memory_space<vmem>>, %arg12: memref<1x4x8x8xf32, #tpu.memory_space<vmem>>, %arg13: memref<8x32xf32, #tpu.memory_space<vmem>>, %arg14: memref<8x32xf32, #tpu.memory_space<vmem>>) attributes {dimension_semantics = [#tpu.dimension_semantics<parallel>, #tpu.dimension_semantics<arbitrary>], iteration_bounds = array<i64: 2, 1>, scalar_prefetch = 0 : i64, scratch_operands = 2 : i64, tpu.core_type = #tpu.core_type<tc>, window_params = [{transform_indices = @transform_0, window_bounds = array<i64: 3>}, {transform_indices = @transform_1, window_bounds = array<i64: 1, 8, 32>}, {transform_indices = @transform_2, window_bounds = array<i64: 1, 8, 32>}, {transform_indices = @transform_3, window_bounds = array<i64: 1, 8, 32>}, {pipeline_mode = #tpu.pipeline_mode<synchronous>, transform_indices = @transform_4, window_bounds = array<i64: 3, 32, 32>}, {pipeline_mode = #tpu.pipeline_mode<synchronous>, transform_indices = @transform_5, window_bounds = array<i64: 3, 1, 32>}, {transform_indices = @transform_6, window_bounds = array<i64: 1, 8, 8>}, {transform_indices = @transform_7, window_bounds = array<i64: 1, 8, 8>}, {transform_indices = @transform_8, window_bounds = array<i64: 1, 8, 8>}, {transform_indices = @transform_9, window_bounds = array<i64: 1, 8, 32>}, {transform_indices = @transform_10, window_bounds = array<i64: 1, 4, 8, 8>}]} {
    %c0 = arith.constant 0 : index
    %0 = memref.load %arg2[%c0] : memref<3xf32, #tpu.memory_space<smem>>
    %c1 = arith.constant 1 : index
    %1 = memref.load %arg2[%c1] : memref<3xf32, #tpu.memory_space<smem>>
    %c2 = arith.constant 2 : index
    %2 = memref.load %arg2[%c2] : memref<3xf32, #tpu.memory_space<smem>>
    %c0_i32 = arith.constant 0 : i32
    %3 = arith.cmpi eq, %arg1, %c0_i32 : i32
    %4 = arith.extui %3 : i1 to i32
    %c0_i32_0 = arith.constant 0 : i32
    %5 = arith.cmpi ne, %4, %c0_i32_0 : i32
    scf.if %5 {
      %c0_71 = arith.constant 0 : index
      %c0_72 = arith.constant 0 : index
      %c0_73 = arith.constant 0 : index
      %172 = vector.load %arg4[%c0_71, %c0_72, %c0_73] : memref<1x8x32xf32, #tpu.memory_space<vmem>>, vector<1x8x32xf32>
      %173 = vector.shape_cast %172 : vector<1x8x32xf32> to vector<8x32xf32>
      %c1_74 = arith.constant 1 : index
      %c0_75 = arith.constant 0 : index
      %c0_76 = arith.constant 0 : index
      %174 = vector.load %arg6[%c1_74, %c0_75, %c0_76] : memref<3x32x32xf32, #tpu.memory_space<vmem>>, vector<1x32x32xf32>
      %175 = vector.shape_cast %174 : vector<1x32x32xf32> to vector<32x32xf32>
      %cst_77 = arith.constant dense<0.000000e+00> : vector<8x32xf32>
      %176 = tpu.matmul %173, %175, %cst_77 {dimension_numbers = #tpu.dot_dimension_numbers<[1], [0], [0], [1], [0, 0, 1, 1], [], []>} : vector<8x32xf32>, vector<32x32xf32>, vector<8x32xf32> -> vector<8x32xf32>
      %c1_78 = arith.constant 1 : index
      %c0_79 = arith.constant 0 : index
      %c0_80 = arith.constant 0 : index
      %177 = vector.load %arg7[%c1_78, %c0_79, %c0_80] : memref<3x1x32xf32, #tpu.memory_space<vmem>>, vector<1x1x32xf32>
      %178 = vector.shape_cast %177 : vector<1x1x32xf32> to vector<1x32xf32>
      %179 = vector.broadcast %178 : vector<1x32xf32> to vector<8x32xf32>
      %180 = arith.addf %176, %179 : vector<8x32xf32>
      %c0_81 = arith.constant 0 : index
      %c0_82 = arith.constant 0 : index
      %c0_83 = arith.constant 0 : index
      %181 = vector.load %arg5[%c0_81, %c0_82, %c0_83] : memref<1x8x32xf32, #tpu.memory_space<vmem>>, vector<1x8x32xf32>
      %182 = vector.shape_cast %181 : vector<1x8x32xf32> to vector<8x32xf32>
      %c2_84 = arith.constant 2 : index
      %c0_85 = arith.constant 0 : index
      %c0_86 = arith.constant 0 : index
      %183 = vector.load %arg6[%c2_84, %c0_85, %c0_86] : memref<3x32x32xf32, #tpu.memory_space<vmem>>, vector<1x32x32xf32>
      %184 = vector.shape_cast %183 : vector<1x32x32xf32> to vector<32x32xf32>
      %cst_87 = arith.constant dense<0.000000e+00> : vector<8x32xf32>
      %185 = tpu.matmul %182, %184, %cst_87 {dimension_numbers = #tpu.dot_dimension_numbers<[1], [0], [0], [1], [0, 0, 1, 1], [], []>} : vector<8x32xf32>, vector<32x32xf32>, vector<8x32xf32> -> vector<8x32xf32>
      %c2_88 = arith.constant 2 : index
      %c0_89 = arith.constant 0 : index
      %c0_90 = arith.constant 0 : index
      %186 = vector.load %arg7[%c2_88, %c0_89, %c0_90] : memref<3x1x32xf32, #tpu.memory_space<vmem>>, vector<1x1x32xf32>
      %187 = vector.shape_cast %186 : vector<1x1x32xf32> to vector<1x32xf32>
      %188 = vector.broadcast %187 : vector<1x32xf32> to vector<8x32xf32>
      %189 = arith.addf %185, %188 : vector<8x32xf32>
      %c0_91 = arith.constant 0 : index
      %c0_92 = arith.constant 0 : index
      %190 = vector.load %arg13[%c0_91, %c0_92] : memref<8x32xf32, #tpu.memory_space<vmem>>, vector<8x32xf32>
      tpu.vector_store %arg13[%c0_91, %c0_92], %180 {strides = array<i32>} : memref<8x32xf32, #tpu.memory_space<vmem>>, vector<8x32xf32>,
      %c0_93 = arith.constant 0 : index
      %c0_94 = arith.constant 0 : index
      %191 = vector.load %arg14[%c0_93, %c0_94] : memref<8x32xf32, #tpu.memory_space<vmem>>, vector<8x32xf32>
      tpu.vector_store %arg14[%c0_93, %c0_94], %189 {strides = array<i32>} : memref<8x32xf32, #tpu.memory_space<vmem>>, vector<8x32xf32>,
    } else {
    }
    %c0_1 = arith.constant 0 : index
    %c0_2 = arith.constant 0 : index
    %c0_3 = arith.constant 0 : index
    %6 = vector.load %arg3[%c0_1, %c0_2, %c0_3] : memref<1x8x32xf32, #tpu.memory_space<vmem>>, vector<1x8x32xf32>
    %7 = vector.shape_cast %6 : vector<1x8x32xf32> to vector<8x32xf32>
    %c0_4 = arith.constant 0 : index
    %c0_5 = arith.constant 0 : index
    %c0_6 = arith.constant 0 : index
    %8 = vector.load %arg6[%c0_4, %c0_5, %c0_6] : memref<3x32x32xf32, #tpu.memory_space<vmem>>, vector<1x32x32xf32>
    %9 = vector.shape_cast %8 : vector<1x32x32xf32> to vector<32x32xf32>
    %cst = arith.constant dense<0.000000e+00> : vector<8x32xf32>
    %10 = tpu.matmul %7, %9, %cst {dimension_numbers = #tpu.dot_dimension_numbers<[1], [0], [0], [1], [0, 0, 1, 1], [], []>} : vector<8x32xf32>, vector<32x32xf32>, vector<8x32xf32> -> vector<8x32xf32>
    %c0_7 = arith.constant 0 : index
    %c0_8 = arith.constant 0 : index
    %c0_9 = arith.constant 0 : index
    %11 = vector.load %arg7[%c0_7, %c0_8, %c0_9] : memref<3x1x32xf32, #tpu.memory_space<vmem>>, vector<1x1x32xf32>
    %12 = vector.shape_cast %11 : vector<1x1x32xf32> to vector<1x32xf32>
    %13 = vector.broadcast %12 : vector<1x32xf32> to vector<8x32xf32>
    %14 = arith.addf %10, %13 : vector<8x32xf32>
    %c0_10 = arith.constant 0 : index
    %c0_11 = arith.constant 0 : index
    %15 = vector.load %arg13[%c0_10, %c0_11] : memref<8x32xf32, #tpu.memory_space<vmem>>, vector<8x32xf32>
    %c0_12 = arith.constant 0 : index
    %c0_13 = arith.constant 0 : index
    %16 = vector.load %arg14[%c0_12, %c0_13] : memref<8x32xf32, #tpu.memory_space<vmem>>, vector<8x32xf32>
    %c0_14 = arith.constant 0 : index
    %c0_15 = arith.constant 0 : index
    %c0_16 = arith.constant 0 : index
    %17 = vector.load %arg10[%c0_14, %c0_15, %c0_16] : memref<1x8x8xi8, #tpu.memory_space<vmem>>, vector<1x8x8xi8>
    %18 = vector.shape_cast %17 : vector<1x8x8xi8> to vector<8x8xi8>
    %19 = arith.sitofp %18 : vector<8x8xi8> to vector<8x8xf32>
    %cst_17 = arith.constant -1.000000e+32 : f32
    %20 = vector.broadcast %cst_17 : f32 to vector<8x8xf32>
    %21 = arith.mulf %19, %20 : vector<8x8xf32>
    %cst_18 = arith.constant -1.000000e+05 : f32
    %22 = vector.broadcast %cst_18 : f32 to vector<8x8xf32>
    %23 = arith.mulf %19, %22 : vector<8x8xf32>
    %c0_19 = arith.constant 0 : index
    %c0_20 = arith.constant 0 : index
    %c0_21 = arith.constant 0 : index
    %24 = vector.load %arg8[%c0_19, %c0_20, %c0_21] : memref<1x8x8xf32, #tpu.memory_space<vmem>>, vector<1x8x8xf32>
    %25 = vector.shape_cast %24 : vector<1x8x8xf32> to vector<8x8xf32>
    %26 = arith.addf %25, %23 : vector<8x8xf32>
    %cst_22 = arith.constant dense<0xFF800000> : vector<8xf32>
    %27 = vector.multi_reduction <maximumf>, %26, %cst_22 [1] : vector<8x8xf32> to vector<8xf32>
    %28 = vector.shape_cast %27 : vector<8xf32> to vector<8x1xf32>
    %29 = vector.broadcast %28 : vector<8x1xf32> to vector<8x8xf32>
    %30 = arith.subf %26, %29 : vector<8x8xf32>
    %31 = math.exp %30 : vector<8x8xf32>
    %cst_23 = arith.constant dense<0.000000e+00> : vector<8xf32>
    %32 = vector.multi_reduction <add>, %31, %cst_23 [1] : vector<8x8xf32> to vector<8xf32>
    %33 = vector.shape_cast %32 : vector<8xf32> to vector<8x1xf32>
    %34 = tpu.reciprocal %33 {approx = true} : vector<8x1xf32> -> vector<8x1xf32>
    %35 = vector.broadcast %34 : vector<8x1xf32> to vector<8x8xf32>
    %36 = arith.mulf %31, %35 : vector<8x8xf32>
    %c0_24 = arith.constant 0 : index
    %c0_25 = arith.constant 0 : index
    %c0_26 = arith.constant 0 : index
    %37 = vector.load %arg9[%c0_24, %c0_25, %c0_26] : memref<1x8x8xf32, #tpu.memory_space<vmem>>, vector<1x8x8xf32>
    %38 = vector.shape_cast %37 : vector<1x8x8xf32> to vector<8x8xf32>
    %39 = math.absf %38 : vector<8x8xf32>
    %cst_27 = arith.constant 0.000000e+00 : f32
    %40 = vector.broadcast %cst_27 : f32 to vector<8x8xf32>
    %41 = arith.subf %40, %39 : vector<8x8xf32>
    %42 = math.exp %41 : vector<8x8xf32>
    %43 = arith.addf %42, %23 : vector<8x8xf32>
    %cst_28 = arith.constant dense<0xFF800000> : vector<8xf32>
    %44 = vector.multi_reduction <maximumf>, %43, %cst_28 [1] : vector<8x8xf32> to vector<8xf32>
    %45 = vector.shape_cast %44 : vector<8xf32> to vector<8x1xf32>
    %46 = vector.broadcast %45 : vector<8x1xf32> to vector<8x8xf32>
    %47 = arith.subf %43, %46 : vector<8x8xf32>
    %48 = math.exp %47 : vector<8x8xf32>
    %cst_29 = arith.constant dense<0.000000e+00> : vector<8xf32>
    %49 = vector.multi_reduction <add>, %48, %cst_29 [1] : vector<8x8xf32> to vector<8xf32>
    %50 = vector.shape_cast %49 : vector<8xf32> to vector<8x1xf32>
    %51 = tpu.reciprocal %50 {approx = true} : vector<8x1xf32> -> vector<8x1xf32>
    %52 = vector.broadcast %51 : vector<8x1xf32> to vector<8x8xf32>
    %53 = arith.mulf %48, %52 : vector<8x8xf32>
    %54 = tpu.iota {dimensions = array<i32: 0>} : vector<8x1xi32>
    %c8_i32 = arith.constant 8 : i32
    %55 = arith.muli %arg1, %c8_i32 : i32
    %56 = vector.broadcast %55 : i32 to vector<8x1xi32>
    %57 = arith.addi %54, %56 : vector<8x1xi32>
    %c0_i32_30 = arith.constant 0 : i32
    %58 = vector.broadcast %c0_i32_30 : i32 to vector<8x1xi32>
    %59 = arith.cmpi eq, %57, %58 : vector<8x1xi32>
    %cst_31 = arith.constant 0.000000e+00 : f32
    %60 = vector.broadcast %cst_31 : f32 to vector<8x1xf32>
    %61 = vector.broadcast %0 : f32 to vector<8x1xf32>
    %62 = arith.select %59, %60, %61 : vector<8x1xi1>, vector<8x1xf32>
    %63 = vector.broadcast %1 : f32 to vector<8x8xf32>
    %64 = arith.mulf %63, %36 : vector<8x8xf32>
    %65 = vector.broadcast %2 : f32 to vector<8x8xf32>
    %66 = arith.mulf %65, %53 : vector<8x8xf32>
    %67 = arith.addf %64, %66 : vector<8x8xf32>
    %cst_32 = arith.constant 0.000000e+00 : f32
    %68 = vector.shape_cast %59 : vector<8x1xi1> to vector<8x1xi1>
    %69 = vector.broadcast %68 : vector<8x1xi1> to vector<8x8xi1>
    %70 = vector.broadcast %cst_32 : f32 to vector<8x8xf32>
    %71 = arith.select %69, %70, %67 : vector<8x8xi1>, vector<8x8xf32>
    %72 = vector.extract_strided_slice %14 {offsets = [0, 0], sizes = [8, 8], strides = [1, 1]} : vector<8x32xf32> to vector<8x8xf32>
    %73 = vector.extract_strided_slice %15 {offsets = [0, 0], sizes = [8, 8], strides = [1, 1]} : vector<8x32xf32> to vector<8x8xf32>
    %74 = vector.extract_strided_slice %16 {offsets = [0, 0], sizes = [8, 8], strides = [1, 1]} : vector<8x32xf32> to vector<8x8xf32>
    %cst_33 = arith.constant dense<0.000000e+00> : vector<8x8xf32>
    %75 = tpu.matmul %72, %73, %cst_33 {dimension_numbers = #tpu.dot_dimension_numbers<[1], [1], [0], [0], [0, 0, 1, 0], [], []>} : vector<8x8xf32>, vector<8x8xf32>, vector<8x8xf32> -> vector<8x8xf32>
    %cst_34 = arith.constant 0.353553385 : f32
    %76 = vector.broadcast %cst_34 : f32 to vector<8x8xf32>
    %77 = arith.mulf %75, %76 : vector<8x8xf32>
    %78 = arith.addf %77, %21 : vector<8x8xf32>
    %cst_35 = arith.constant dense<0xFF800000> : vector<8xf32>
    %79 = vector.multi_reduction <maximumf>, %78, %cst_35 [1] : vector<8x8xf32> to vector<8xf32>
    %80 = vector.shape_cast %79 : vector<8xf32> to vector<8x1xf32>
    %81 = vector.broadcast %80 : vector<8x1xf32> to vector<8x8xf32>
    %82 = arith.subf %78, %81 : vector<8x8xf32>
    %83 = math.exp %82 : vector<8x8xf32>
    %cst_36 = arith.constant dense<0.000000e+00> : vector<8xf32>
    %84 = vector.multi_reduction <add>, %83, %cst_36 [1] : vector<8x8xf32> to vector<8xf32>
    %85 = vector.shape_cast %84 : vector<8xf32> to vector<8x1xf32>
    %86 = tpu.reciprocal %85 {approx = true} : vector<8x1xf32> -> vector<8x1xf32>
    %87 = vector.broadcast %86 : vector<8x1xf32> to vector<8x8xf32>
    %88 = arith.mulf %83, %87 : vector<8x8xf32>
    %89 = vector.broadcast %62 : vector<8x1xf32> to vector<8x8xf32>
    %90 = arith.mulf %89, %88 : vector<8x8xf32>
    %91 = arith.addf %90, %71 : vector<8x8xf32>
    %c0_37 = arith.constant 0 : index
    %c0_38 = arith.constant 0 : index
    %c0_39 = arith.constant 0 : index
    %c0_40 = arith.constant 0 : index
    %92 = vector.load %arg12[%c0_37, %c0_38, %c0_39, %c0_40] : memref<1x4x8x8xf32, #tpu.memory_space<vmem>>, vector<1x1x8x8xf32>
    %93 = vector.shape_cast %92 : vector<1x1x8x8xf32> to vector<8x8xf32>
    %94 = vector.shape_cast %91 : vector<8x8xf32> to vector<1x1x8x8xf32>
    tpu.vector_store %arg12[%c0_37, %c0_38, %c0_39, %c0_40], %94 {strides = array<i32>} : memref<1x4x8x8xf32, #tpu.memory_space<vmem>>, vector<1x1x8x8xf32>,
    %cst_41 = arith.constant dense<0.000000e+00> : vector<8x8xf32>
    %95 = tpu.matmul %91, %74, %cst_41 {dimension_numbers = #tpu.dot_dimension_numbers<[1], [0], [0], [1], [0, 0, 1, 1], [], []>} : vector<8x8xf32>, vector<8x8xf32>, vector<8x8xf32> -> vector<8x8xf32>
    %96 = vector.extract_strided_slice %14 {offsets = [0, 8], sizes = [8, 8], strides = [1, 1]} : vector<8x32xf32> to vector<8x8xf32>
    %97 = vector.extract_strided_slice %15 {offsets = [0, 8], sizes = [8, 8], strides = [1, 1]} : vector<8x32xf32> to vector<8x8xf32>
    %98 = vector.extract_strided_slice %16 {offsets = [0, 8], sizes = [8, 8], strides = [1, 1]} : vector<8x32xf32> to vector<8x8xf32>
    %cst_42 = arith.constant dense<0.000000e+00> : vector<8x8xf32>
    %99 = tpu.matmul %96, %97, %cst_42 {dimension_numbers = #tpu.dot_dimension_numbers<[1], [1], [0], [0], [0, 0, 1, 0], [], []>} : vector<8x8xf32>, vector<8x8xf32>, vector<8x8xf32> -> vector<8x8xf32>
    %cst_43 = arith.constant 0.353553385 : f32
    %100 = vector.broadcast %cst_43 : f32 to vector<8x8xf32>
    %101 = arith.mulf %99, %100 : vector<8x8xf32>
    %102 = arith.addf %101, %21 : vector<8x8xf32>
    %cst_44 = arith.constant dense<0xFF800000> : vector<8xf32>
    %103 = vector.multi_reduction <maximumf>, %102, %cst_44 [1] : vector<8x8xf32> to vector<8xf32>
    %104 = vector.shape_cast %103 : vector<8xf32> to vector<8x1xf32>
    %105 = vector.broadcast %104 : vector<8x1xf32> to vector<8x8xf32>
    %106 = arith.subf %102, %105 : vector<8x8xf32>
    %107 = math.exp %106 : vector<8x8xf32>
    %cst_45 = arith.constant dense<0.000000e+00> : vector<8xf32>
    %108 = vector.multi_reduction <add>, %107, %cst_45 [1] : vector<8x8xf32> to vector<8xf32>
    %109 = vector.shape_cast %108 : vector<8xf32> to vector<8x1xf32>
    %110 = tpu.reciprocal %109 {approx = true} : vector<8x1xf32> -> vector<8x1xf32>
    %111 = vector.broadcast %110 : vector<8x1xf32> to vector<8x8xf32>
    %112 = arith.mulf %107, %111 : vector<8x8xf32>
    %113 = vector.broadcast %62 : vector<8x1xf32> to vector<8x8xf32>
    %114 = arith.mulf %113, %112 : vector<8x8xf32>
    %115 = arith.addf %114, %71 : vector<8x8xf32>
    %c0_46 = arith.constant 0 : index
    %c1_47 = arith.constant 1 : index
    %c0_48 = arith.constant 0 : index
    %c0_49 = arith.constant 0 : index
    %116 = vector.load %arg12[%c0_46, %c1_47, %c0_48, %c0_49] : memref<1x4x8x8xf32, #tpu.memory_space<vmem>>, vector<1x1x8x8xf32>
    %117 = vector.shape_cast %116 : vector<1x1x8x8xf32> to vector<8x8xf32>
    %118 = vector.shape_cast %115 : vector<8x8xf32> to vector<1x1x8x8xf32>
    tpu.vector_store %arg12[%c0_46, %c1_47, %c0_48, %c0_49], %118 {strides = array<i32>} : memref<1x4x8x8xf32, #tpu.memory_space<vmem>>, vector<1x1x8x8xf32>,
    %cst_50 = arith.constant dense<0.000000e+00> : vector<8x8xf32>
    %119 = tpu.matmul %115, %98, %cst_50 {dimension_numbers = #tpu.dot_dimension_numbers<[1], [0], [0], [1], [0, 0, 1, 1], [], []>} : vector<8x8xf32>, vector<8x8xf32>, vector<8x8xf32> -> vector<8x8xf32>
    %120 = vector.extract_strided_slice %14 {offsets = [0, 16], sizes = [8, 8], strides = [1, 1]} : vector<8x32xf32> to vector<8x8xf32>
    %121 = vector.extract_strided_slice %15 {offsets = [0, 16], sizes = [8, 8], strides = [1, 1]} : vector<8x32xf32> to vector<8x8xf32>
    %122 = vector.extract_strided_slice %16 {offsets = [0, 16], sizes = [8, 8], strides = [1, 1]} : vector<8x32xf32> to vector<8x8xf32>
    %cst_51 = arith.constant dense<0.000000e+00> : vector<8x8xf32>
    %123 = tpu.matmul %120, %121, %cst_51 {dimension_numbers = #tpu.dot_dimension_numbers<[1], [1], [0], [0], [0, 0, 1, 0], [], []>} : vector<8x8xf32>, vector<8x8xf32>, vector<8x8xf32> -> vector<8x8xf32>
    %cst_52 = arith.constant 0.353553385 : f32
    %124 = vector.broadcast %cst_52 : f32 to vector<8x8xf32>
    %125 = arith.mulf %123, %124 : vector<8x8xf32>
    %126 = arith.addf %125, %21 : vector<8x8xf32>
    %cst_53 = arith.constant dense<0xFF800000> : vector<8xf32>
    %127 = vector.multi_reduction <maximumf>, %126, %cst_53 [1] : vector<8x8xf32> to vector<8xf32>
    %128 = vector.shape_cast %127 : vector<8xf32> to vector<8x1xf32>
    %129 = vector.broadcast %128 : vector<8x1xf32> to vector<8x8xf32>
    %130 = arith.subf %126, %129 : vector<8x8xf32>
    %131 = math.exp %130 : vector<8x8xf32>
    %cst_54 = arith.constant dense<0.000000e+00> : vector<8xf32>
    %132 = vector.multi_reduction <add>, %131, %cst_54 [1] : vector<8x8xf32> to vector<8xf32>
    %133 = vector.shape_cast %132 : vector<8xf32> to vector<8x1xf32>
    %134 = tpu.reciprocal %133 {approx = true} : vector<8x1xf32> -> vector<8x1xf32>
    %135 = vector.broadcast %134 : vector<8x1xf32> to vector<8x8xf32>
    %136 = arith.mulf %131, %135 : vector<8x8xf32>
    %137 = vector.broadcast %62 : vector<8x1xf32> to vector<8x8xf32>
    %138 = arith.mulf %137, %136 : vector<8x8xf32>
    %139 = arith.addf %138, %71 : vector<8x8xf32>
    %c0_55 = arith.constant 0 : index
    %c2_56 = arith.constant 2 : index
    %c0_57 = arith.constant 0 : index
    %c0_58 = arith.constant 0 : index
    %140 = vector.load %arg12[%c0_55, %c2_56, %c0_57, %c0_58] : memref<1x4x8x8xf32, #tpu.memory_space<vmem>>, vector<1x1x8x8xf32>
    %141 = vector.shape_cast %140 : vector<1x1x8x8xf32> to vector<8x8xf32>
    %142 = vector.shape_cast %139 : vector<8x8xf32> to vector<1x1x8x8xf32>
    tpu.vector_store %arg12[%c0_55, %c2_56, %c0_57, %c0_58], %142 {strides = array<i32>} : memref<1x4x8x8xf32, #tpu.memory_space<vmem>>, vector<1x1x8x8xf32>,
    %cst_59 = arith.constant dense<0.000000e+00> : vector<8x8xf32>
    %143 = tpu.matmul %139, %122, %cst_59 {dimension_numbers = #tpu.dot_dimension_numbers<[1], [0], [0], [1], [0, 0, 1, 1], [], []>} : vector<8x8xf32>, vector<8x8xf32>, vector<8x8xf32> -> vector<8x8xf32>
    %144 = vector.extract_strided_slice %14 {offsets = [0, 24], sizes = [8, 8], strides = [1, 1]} : vector<8x32xf32> to vector<8x8xf32>
    %145 = vector.extract_strided_slice %15 {offsets = [0, 24], sizes = [8, 8], strides = [1, 1]} : vector<8x32xf32> to vector<8x8xf32>
    %146 = vector.extract_strided_slice %16 {offsets = [0, 24], sizes = [8, 8], strides = [1, 1]} : vector<8x32xf32> to vector<8x8xf32>
    %cst_60 = arith.constant dense<0.000000e+00> : vector<8x8xf32>
    %147 = tpu.matmul %144, %145, %cst_60 {dimension_numbers = #tpu.dot_dimension_numbers<[1], [1], [0], [0], [0, 0, 1, 0], [], []>} : vector<8x8xf32>, vector<8x8xf32>, vector<8x8xf32> -> vector<8x8xf32>
    %cst_61 = arith.constant 0.353553385 : f32
    %148 = vector.broadcast %cst_61 : f32 to vector<8x8xf32>
    %149 = arith.mulf %147, %148 : vector<8x8xf32>
    %150 = arith.addf %149, %21 : vector<8x8xf32>
    %cst_62 = arith.constant dense<0xFF800000> : vector<8xf32>
    %151 = vector.multi_reduction <maximumf>, %150, %cst_62 [1] : vector<8x8xf32> to vector<8xf32>
    %152 = vector.shape_cast %151 : vector<8xf32> to vector<8x1xf32>
    %153 = vector.broadcast %152 : vector<8x1xf32> to vector<8x8xf32>
    %154 = arith.subf %150, %153 : vector<8x8xf32>
    %155 = math.exp %154 : vector<8x8xf32>
    %cst_63 = arith.constant dense<0.000000e+00> : vector<8xf32>
    %156 = vector.multi_reduction <add>, %155, %cst_63 [1] : vector<8x8xf32> to vector<8xf32>
    %157 = vector.shape_cast %156 : vector<8xf32> to vector<8x1xf32>
    %158 = tpu.reciprocal %157 {approx = true} : vector<8x1xf32> -> vector<8x1xf32>
    %159 = vector.broadcast %158 : vector<8x1xf32> to vector<8x8xf32>
    %160 = arith.mulf %155, %159 : vector<8x8xf32>
    %161 = vector.broadcast %62 : vector<8x1xf32> to vector<8x8xf32>
    %162 = arith.mulf %161, %160 : vector<8x8xf32>
    %163 = arith.addf %162, %71 : vector<8x8xf32>
    %c0_64 = arith.constant 0 : index
    %c3 = arith.constant 3 : index
    %c0_65 = arith.constant 0 : index
    %c0_66 = arith.constant 0 : index
    %164 = vector.load %arg12[%c0_64, %c3, %c0_65, %c0_66] : memref<1x4x8x8xf32, #tpu.memory_space<vmem>>, vector<1x1x8x8xf32>
    %165 = vector.shape_cast %164 : vector<1x1x8x8xf32> to vector<8x8xf32>
    %166 = vector.shape_cast %163 : vector<8x8xf32> to vector<1x1x8x8xf32>
    tpu.vector_store %arg12[%c0_64, %c3, %c0_65, %c0_66], %166 {strides = array<i32>} : memref<1x4x8x8xf32, #tpu.memory_space<vmem>>, vector<1x1x8x8xf32>,
    %cst_67 = arith.constant dense<0.000000e+00> : vector<8x8xf32>
    %167 = tpu.matmul %163, %146, %cst_67 {dimension_numbers = #tpu.dot_dimension_numbers<[1], [0], [0], [1], [0, 0, 1, 1], [], []>} : vector<8x8xf32>, vector<8x8xf32>, vector<8x8xf32> -> vector<8x8xf32>
    %168 = tpu.concatenate %95, %119, %143, %167 in 1 : vector<8x8xf32>, vector<8x8xf32>, vector<8x8xf32>, vector<8x8xf32> -> vector<8x32xf32>
    %c0_68 = arith.constant 0 : index
    %c0_69 = arith.constant 0 : index
    %c0_70 = arith.constant 0 : index
    %169 = vector.load %arg11[%c0_68, %c0_69, %c0_70] : memref<1x8x32xf32, #tpu.memory_space<vmem>>, vector<1x8x32xf32>
    %170 = vector.shape_cast %169 : vector<1x8x32xf32> to vector<8x32xf32>
    %171 = vector.shape_cast %168 : vector<8x32xf32> to vector<1x8x32xf32>
    tpu.vector_store %arg11[%c0_68, %c0_69, %c0_70], %171 {strides = array<i32>} : memref<1x8x32xf32, #tpu.memory_space<vmem>>, vector<1x8x32xf32>,
    return
  }
  func.func @transform_0(%arg0: i32, %arg1: i32) -> i32 {
    %c0_i32 = arith.constant 0 : i32
    %c0_i32_0 = arith.constant 0 : i32
    return %c0_i32 : i32
  }
  func.func @transform_1(%arg0: i32, %arg1: i32) -> (i32, i32, i32) {
    %c0_i32 = arith.constant 0 : i32
    %c0_i32_0 = arith.constant 0 : i32
    return %arg0, %arg1, %c0_i32 : i32, i32, i32
  }
  func.func @transform_2(%arg0: i32, %arg1: i32) -> (i32, i32, i32) {
    %c0_i32 = arith.constant 0 : i32
    %c0_i32_0 = arith.constant 0 : i32
    %c0_i32_1 = arith.constant 0 : i32
    return %arg0, %c0_i32, %c0_i32_0 : i32, i32, i32
  }
  func.func @transform_3(%arg0: i32, %arg1: i32) -> (i32, i32, i32) {
    %c0_i32 = arith.constant 0 : i32
    %c0_i32_0 = arith.constant 0 : i32
    %c0_i32_1 = arith.constant 0 : i32
    return %arg0, %c0_i32, %c0_i32_0 : i32, i32, i32
  }
  func.func @transform_4(%arg0: i32, %arg1: i32) -> (i32, i32, i32) {
    %c0_i32 = arith.constant 0 : i32
    %c0_i32_0 = arith.constant 0 : i32
    %c0_i32_1 = arith.constant 0 : i32
    %c0_i32_2 = arith.constant 0 : i32
    return %c0_i32, %c0_i32_0, %c0_i32_1 : i32, i32, i32
  }
  func.func @transform_5(%arg0: i32, %arg1: i32) -> (i32, i32, i32) {
    %c0_i32 = arith.constant 0 : i32
    %c0_i32_0 = arith.constant 0 : i32
    %c0_i32_1 = arith.constant 0 : i32
    %c0_i32_2 = arith.constant 0 : i32
    return %c0_i32, %c0_i32_0, %c0_i32_1 : i32, i32, i32
  }
  func.func @transform_6(%arg0: i32, %arg1: i32) -> (i32, i32, i32) {
    %c0_i32 = arith.constant 0 : i32
    %c0_i32_0 = arith.constant 0 : i32
    return %arg0, %arg1, %c0_i32 : i32, i32, i32
  }
  func.func @transform_7(%arg0: i32, %arg1: i32) -> (i32, i32, i32) {
    %c0_i32 = arith.constant 0 : i32
    %c0_i32_0 = arith.constant 0 : i32
    return %arg0, %arg1, %c0_i32 : i32, i32, i32
  }
  func.func @transform_8(%arg0: i32, %arg1: i32) -> (i32, i32, i32) {
    %c0_i32 = arith.constant 0 : i32
    %c0_i32_0 = arith.constant 0 : i32
    return %arg0, %arg1, %c0_i32 : i32, i32, i32
  }
  func.func @transform_9(%arg0: i32, %arg1: i32) -> (i32, i32, i32) {
    %c0_i32 = arith.constant 0 : i32
    %c0_i32_0 = arith.constant 0 : i32
    return %arg0, %arg1, %c0_i32 : i32, i32, i32
  }
  func.func @transform_10(%arg0: i32, %arg1: i32) -> (i32, i32, i32, i32) {
    %c0_i32 = arith.constant 0 : i32
    %c0_i32_0 = arith.constant 0 : i32
    %c0_i32_1 = arith.constant 0 : i32
    return %arg0, %c0_i32, %arg1, %c0_i32_0 : i32, i32, i32, i32
  }
}

</mosaic_0001>

<llo_original>
// kernel: tpu_custom_call.1
$region0: #{tpu_custom_call.1}
  #allocation0 [shape = 'u32[]', space=smem, size = 0x4, offset = 0x4, fixed_abs, tag = 'smem constant byte address 0x4 - core index']
  #allocation1 [shape = 'u32[144,128]{1,0:T(1,128)}', space=vmem, size = 0x12000, scoped, tag = 'internal scratch']
  #allocation2 [shape = 'f32[8,32]{1,0:T(8,128)}', space=vmem, size = 0x1000, scoped, tag = 'scratch operand']
  #allocation3 [shape = 'f32[8,32]{1,0:T(8,128)}', space=vmem, size = 0x1000, scoped, tag = 'scratch operand']
  %s0 = inlined_call_operand.hbm [shape: f32[3], index: 0, kind: input, shape index: {}]
  %s1 = inlined_call_operand.hbm [shape: f32[2,8,32], index: 1, kind: input, shape index: {}]
  %s2 = inlined_call_operand.hbm [shape: f32[2,8,32], index: 2, kind: input, shape index: {}]
  %s3 = inlined_call_operand.hbm [shape: f32[2,8,32], index: 3, kind: input, shape index: {}]
  %s4 = inlined_call_operand.hbm [shape: f32[3,32,32], index: 4, kind: input, shape index: {}]
  %s5 = inlined_call_operand.vmem [shape: f32[3,1,32], index: 5, kind: input, shape index: {}]
  %s6 = inlined_call_operand.hbm [shape: f32[2,8,8], index: 6, kind: input, shape index: {}]
  %s7 = inlined_call_operand.hbm [shape: f32[2,8,8], index: 7, kind: input, shape index: {}]
  %s8 = inlined_call_operand.vmem [shape: s8[2,8,8], index: 8, kind: input, shape index: {}]
  %s9 = inlined_call_operand.hbm [shape: f32[2,8,32], index: 9, kind: output, shape index: {0}]
  %s10 = inlined_call_operand.hbm [shape: f32[2,4,8,8], index: 10, kind: output, shape index: {1}]
  %11 = xla_tuple %s9, %s10
  %s12 = sld [smem:[#allocation0]]
  $region109: #{tpu_custom_call.1} parent=0
    _
  %s14 = ssub.s32 1, %s12
  %s15 = scalar_select 0, %s14, %s12
  $region1: #{tpu_custom_call.1} parent=0
    #allocation4 [shape = 'u8[512]{0}', space=smem, size = 0x200, scoped, tag = 'input window, operand 0, single buffered']
    #allocation5 [shape = 's32[2]{0}', space=sflag, size = 0x8, scoped, tag = 'scoped memory for tpu_custom_call.1']
    #allocation6 [shape = 's32[2]{0}', space=sflag, size = 0x8, scoped, tag = 'scoped memory for tpu_custom_call.1']
    #allocation7 [shape = 's32[2]{0}', space=sflag, size = 0x8, scoped, tag = 'scoped memory for tpu_custom_call.1']
    #allocation8 [shape = 'u8[8192]{0}', space=vmem, size = 0x2000, scoped, tag = 'input window, operand 1']
    #allocation9 [shape = 'u8[8192]{0}', space=vmem, size = 0x2000, scoped, tag = 'input window, operand 2']
    #allocation10 [shape = 's32[2]{0}', space=sflag, size = 0x8, scoped, tag = 'scoped memory for tpu_custom_call.1']
    #allocation11 [shape = 'u8[8192]{0}', space=vmem, size = 0x2000, scoped, tag = 'input window, operand 3']
    #allocation12 [shape = 'u8[49152]{0}', space=vmem, size = 0xc000, scoped, tag = 'input window, operand 4, single buffered']
    #allocation13 [shape = 's32[1]{0}', space=sflag, size = 0x4, scoped, tag = 'scoped memory for tpu_custom_call.1']
    #allocation14 [shape = 'u8[8192]{0}', space=vmem, size = 0x2000, scoped, tag = 'input window, operand 6']
    #allocation15 [shape = 'u8[8192]{0}', space=vmem, size = 0x2000, scoped, tag = 'input window, operand 7']
    #allocation16 [shape = 'u8[8192]{0}', space=vmem, size = 0x2000, scoped, tag = 'output window, operand 0']
    #allocation17 [shape = 'u8[32768]{0}', space=vmem, size = 0x8000, scoped, tag = 'output window, operand 1']
    #allocation18 [shape = 's32[2]{0}', space=sflag, size = 0x8, scoped, tag = 'scoped memory for tpu_custom_call.1']
    %16 = vsyncpa [#allocation7], 0
    %17 = vsyncpa [#allocation5], 0
    %s18 = scalar_lea.sflag [#allocation5], 1
    %19 = vsyncpa %s18, 0
    %20 = vsyncpa [#allocation10], 0
    %s21 = scalar_lea.sflag [#allocation10], 1
    %22 = vsyncpa %s21, 0
    %23 = vsyncpa [#allocation13], 0
    %24 = vsyncpa [#allocation6], 0
    %s25 = scalar_lea.sflag [#allocation6], 1
    %26 = vsyncpa %s25, 0
    %27 = vsyncpa [#allocation18], 0
    %s28 = scalar_lea.sflag [#allocation18], 1
    %29 = vsyncpa %s28, 0
    loop: start=0, step=1, limit=4
    $region2: #{tpu_custom_call.1} parent=1 // loop_pre_header
      _
    $region3: #{tpu_custom_call.1} parent=1 // loop_header
      %s31 = sphi 0, %s35
      %p32 = scmp.ge.s32.totalorder %s31, 4
      %s38 = sphi 0, %s50
      %s39 = sphi 0, %s46
      %s40 = sphi 0, %s38
      %s41 = sphi 0, %s39
      %s42 = sphi 0, %s40
      %s43 = sphi 0, %s41
      %s51 = sphi 0, %s51
      %s53 = sphi 0, %s51
      %s54 = sphi 0, %s53
      %s68 = sphi 0, %s54
      %s76 = sphi 0, %s78
      %s79 = sphi 0, %s76
      %s80 = sphi 0, %s79
      %s96 = sphi 0, %s80
      %s102 = sphi 0, %s104
      %s105 = sphi 0, %s102
      %s106 = sphi 0, %s105
      %s122 = sphi 0, %s106
      %s128 = sphi 0, %s130
      %s131 = sphi 0, %s128
      %s132 = sphi 0, %s131
      %s148 = sphi 0, %s132
      %s152 = sphi 0, %s152
      %s154 = sphi 0, %s152
      %s155 = sphi 0, %s154
      %s169 = sphi 0, %s155
      %s173 = sphi 0, %s173
      %s175 = sphi 0, %s173
      %s176 = sphi 0, %s175
      %s190 = sphi 0, %s176
      %s198 = sphi 0, %s200
      %s201 = sphi 0, %s198
      %s202 = sphi 0, %s201
      %s218 = sphi 0, %s202
      %s226 = sphi 0, %s228
      %s229 = sphi 0, %s226
      %s230 = sphi 0, %s229
      %s246 = sphi 0, %s230
      %s254 = sphi 0, %s256
      %s257 = sphi 0, %s254
      %s258 = sphi 0, %s257
      %s274 = sphi 0, %s258
      %s282 = sphi 0, %s284
      %s285 = sphi 0, %s282
      %s286 = sphi 0, %s285
      %s302 = sphi 0, %s286
      %s310 = sphi 0, %s312
      %s313 = sphi 0, %s310
      %s314 = sphi 0, %s313
      %s330 = sphi 0, %s314
    $region4: #{tpu_custom_call.1} parent=1 // loop_header_branch
      %34 = sbr.rel (%p32) target = $region8
    $region5: #{tpu_custom_call.1} parent=1 // loop_body
      %s36 = ssub.s32 %s31, 1
      %s37 = ssub.s32 %s31, 2
      %s44 = sadd.s32 1, %s39
      %p45 = scmp.ge.s32.totalorder %s44, 1
      %s46 = scalar_select %p45, 0, %s44
      %s47 = sadd.s32 1, %s38
      %s48 = scalar_select %p45, %s47, %s38
      %p49 = scmp.ge.s32.totalorder %s48, 2
      %s50 = scalar_select %p49, 0, %s48
      %s52 = sadd.s32 %s51, 1
      %p55 = scmp.eq.s32.totalorder %s31, 1
      %p56 = scmp.ne.s32.totalorder %s51, %s53
      %p57 = scmp.eq.s32.totalorder %s31, 0
      %p58 = por %p56, %p57
      %p59 = scmp.ne.s32.totalorder %s51, %s53
      %p60 = scmp.eq.s32.totalorder %s36, 1
      %p61 = por %p59, %p60
      %p62 = scmp.ne.s32.totalorder %s53, %s54
      %p63 = scmp.eq.s32.totalorder %s36, 0
      %p64 = por %p62, %p63
      %p65 = scmp.ne.s32.totalorder %s53, %s54
      %p66 = scmp.eq.s32.totalorder %s37, 1
      %p67 = por %p65, %p66
      %p69 = scmp.ne.s32.totalorder %s54, %s68
      %p70 = scmp.eq.s32.totalorder %s37, 0
      %p71 = por %p69, %p70
      %s72 = ssub.s32 %s38, %s50
      %s73 = ssub.s32 %s39, %s46
      %s74 = sor.u32 %s72, %s73
      %p75 = scmp.eq.s32.totalorder %s74, 0
      %s77 = sadd.s32 %s76, 1
      %s78 = scalar_select %p75, %s76, %s77
      %p81 = pneg %p75
      %p82 = scmp.eq.s32.totalorder %s31, 1
      %p83 = por %p81, %p82
      %p84 = scmp.ne.s32.totalorder %s76, %s79
      %p85 = scmp.eq.s32.totalorder %s31, 0
      %p86 = por %p84, %p85
      %p87 = scmp.ne.s32.totalorder %s76, %s79
      %p88 = scmp.eq.s32.totalorder %s36, 1
      %p89 = por %p87, %p88
      %p90 = scmp.ne.s32.totalorder %s79, %s80
      %p91 = scmp.eq.s32.totalorder %s36, 0
      %p92 = por %p90, %p91
      %p93 = scmp.ne.s32.totalorder %s79, %s80
      %p94 = scmp.eq.s32.totalorder %s37, 1
      %p95 = por %p93, %p94
      %p97 = scmp.ne.s32.totalorder %s80, %s96
      %p98 = scmp.eq.s32.totalorder %s37, 0
      %p99 = por %p97, %p98
      %s100 = ssub.s32 %s38, %s50
      %p101 = scmp.eq.s32.totalorder %s100, 0
      %s103 = sadd.s32 %s102, 1
      %s104 = scalar_select %p101, %s102, %s103
      %p107 = pneg %p101
      %p108 = scmp.eq.s32.totalorder %s31, 1
      %p109 = por %p107, %p108
      %p110 = scmp.ne.s32.totalorder %s102, %s105
      %p111 = scmp.eq.s32.totalorder %s31, 0
      %p112 = por %p110, %p111
      %p113 = scmp.ne.s32.totalorder %s102, %s105
      %p114 = scmp.eq.s32.totalorder %s36, 1
      %p115 = por %p113, %p114
      %p116 = scmp.ne.s32.totalorder %s105, %s106
      %p117 = scmp.eq.s32.totalorder %s36, 0
      %p118 = por %p116, %p117
      %p119 = scmp.ne.s32.totalorder %s105, %s106
      %p120 = scmp.eq.s32.totalorder %s37, 1
      %p121 = por %p119, %p120
      %p123 = scmp.ne.s32.totalorder %s106, %s122
      %p124 = scmp.eq.s32.totalorder %s37, 0
      %p125 = por %p123, %p124
      %s126 = ssub.s32 %s38, %s50
      %p127 = scmp.eq.s32.totalorder %s126, 0
      %s129 = sadd.s32 %s128, 1
      %s130 = scalar_select %p127, %s128, %s129
      %p133 = pneg %p127
      %p134 = scmp.eq.s32.totalorder %s31, 1
      %p135 = por %p133, %p134
      %p136 = scmp.ne.s32.totalorder %s128, %s131
      %p137 = scmp.eq.s32.totalorder %s31, 0
      %p138 = por %p136, %p137
      %p139 = scmp.ne.s32.totalorder %s128, %s131
      %p140 = scmp.eq.s32.totalorder %s36, 1
      %p141 = por %p139, %p140
      %p142 = scmp.ne.s32.totalorder %s131, %s132
      %p143 = scmp.eq.s32.totalorder %s36, 0
      %p144 = por %p142, %p143
      %p145 = scmp.ne.s32.totalorder %s131, %s132
      %p146 = scmp.eq.s32.totalorder %s37, 1
      %p147 = por %p145, %p146
      %p149 = scmp.ne.s32.totalorder %s132, %s148
      %p150 = scmp.eq.s32.totalorder %s37, 0
      %p151 = por %p149, %p150
      %s153 = sadd.s32 %s152, 1
      %p156 = scmp.eq.s32.totalorder %s31, 1
      %p157 = scmp.ne.s32.totalorder %s152, %s154
      %p158 = scmp.eq.s32.totalorder %s31, 0
      %p159 = por %p157, %p158
      %p160 = scmp.ne.s32.totalorder %s152, %s154
      %p161 = scmp.eq.s32.totalorder %s36, 1
      %p162 = por %p160, %p161
      %p163 = scmp.ne.s32.totalorder %s154, %s155
      %p164 = scmp.eq.s32.totalorder %s36, 0
      %p165 = por %p163, %p164
      %p166 = scmp.ne.s32.totalorder %s154, %s155
      %p167 = scmp.eq.s32.totalorder %s37, 1
      %p168 = por %p166, %p167
      %p170 = scmp.ne.s32.totalorder %s155, %s169
      %p171 = scmp.eq.s32.totalorder %s37, 0
      %p172 = por %p170, %p171
      %s174 = sadd.s32 %s173, 1
      %p177 = scmp.eq.s32.totalorder %s31, 1
      %p178 = scmp.ne.s32.totalorder %s173, %s175
      %p179 = scmp.eq.s32.totalorder %s31, 0
      %p180 = por %p178, %p179
      %p181 = scmp.ne.s32.totalorder %s173, %s175
      %p182 = scmp.eq.s32.totalorder %s36, 1
      %p183 = por %p181, %p182
      %p184 = scmp.ne.s32.totalorder %s175, %s176
      %p185 = scmp.eq.s32.totalorder %s36, 0
      %p186 = por %p184, %p185
      %p187 = scmp.ne.s32.totalorder %s175, %s176
      %p188 = scmp.eq.s32.totalorder %s37, 1
      %p189 = por %p187, %p188
      %p191 = scmp.ne.s32.totalorder %s176, %s190
      %p192 = scmp.eq.s32.totalorder %s37, 0
      %p193 = por %p191, %p192
      %s194 = ssub.s32 %s38, %s50
      %s195 = ssub.s32 %s39, %s46
      %s196 = sor.u32 %s194, %s195
      %p197 = scmp.eq.s32.totalorder %s196, 0
      %s199 = sadd.s32 %s198, 1
      %s200 = scalar_select %p197, %s198, %s199
      %p203 = pneg %p197
      %p204 = scmp.eq.s32.totalorder %s31, 1
      %p205 = por %p203, %p204
      %p206 = scmp.ne.s32.totalorder %s198, %s201
      %p207 = scmp.eq.s32.totalorder %s31, 0
      %p208 = por %p206, %p207
      %p209 = scmp.ne.s32.totalorder %s198, %s201
      %p210 = scmp.eq.s32.totalorder %s36, 1
      %p211 = por %p209, %p210
      %p212 = scmp.ne.s32.totalorder %s201, %s202
      %p213 = scmp.eq.s32.totalorder %s36, 0
      %p214 = por %p212, %p213
      %p215 = scmp.ne.s32.totalorder %s201, %s202
      %p216 = scmp.eq.s32.totalorder %s37, 1
      %p217 = por %p215, %p216
      %p219 = scmp.ne.s32.totalorder %s202, %s218
      %p220 = scmp.eq.s32.totalorder %s37, 0
      %p221 = por %p219, %p220
      %s222 = ssub.s32 %s38, %s50
      %s223 = ssub.s32 %s39, %s46
      %s224 = sor.u32 %s222, %s223
      %p225 = scmp.eq.s32.totalorder %s224, 0
      %s227 = sadd.s32 %s226, 1
      %s228 = scalar_select %p225, %s226, %s227
      %p231 = pneg %p225
      %p232 = scmp.eq.s32.totalorder %s31, 1
      %p233 = por %p231, %p232
      %p234 = scmp.ne.s32.totalorder %s226, %s229
      %p235 = scmp.eq.s32.totalorder %s31, 0
      %p236 = por %p234, %p235
      %p237 = scmp.ne.s32.totalorder %s226, %s229
      %p238 = scmp.eq.s32.totalorder %s36, 1
      %p239 = por %p237, %p238
      %p240 = scmp.ne.s32.totalorder %s229, %s230
      %p241 = scmp.eq.s32.totalorder %s36, 0
      %p242 = por %p240, %p241
      %p243 = scmp.ne.s32.totalorder %s229, %s230
      %p244 = scmp.eq.s32.totalorder %s37, 1
      %p245 = por %p243, %p244
      %p247 = scmp.ne.s32.totalorder %s230, %s246
      %p248 = scmp.eq.s32.totalorder %s37, 0
      %p249 = por %p247, %p248
      %s250 = ssub.s32 %s38, %s50
      %s251 = ssub.s32 %s39, %s46
      %s252 = sor.u32 %s250, %s251
      %p253 = scmp.eq.s32.totalorder %s252, 0
      %s255 = sadd.s32 %s254, 1
      %s256 = scalar_select %p253, %s254, %s255
      %p259 = pneg %p253
      %p260 = scmp.eq.s32.totalorder %s31, 1
      %p261 = por %p259, %p260
      %p262 = scmp.ne.s32.totalorder %s254, %s257
      %p263 = scmp.eq.s32.totalorder %s31, 0
      %p264 = por %p262, %p263
      %p265 = scmp.ne.s32.totalorder %s254, %s257
      %p266 = scmp.eq.s32.totalorder %s36, 1
      %p267 = por %p265, %p266
      %p268 = scmp.ne.s32.totalorder %s257, %s258
      %p269 = scmp.eq.s32.totalorder %s36, 0
      %p270 = por %p268, %p269
      %p271 = scmp.ne.s32.totalorder %s257, %s258
      %p272 = scmp.eq.s32.totalorder %s37, 1
      %p273 = por %p271, %p272
      %p275 = scmp.ne.s32.totalorder %s258, %s274
      %p276 = scmp.eq.s32.totalorder %s37, 0
      %p277 = por %p275, %p276
      %s278 = ssub.s32 %s38, %s50
      %s279 = ssub.s32 %s39, %s46
      %s280 = sor.u32 %s278, %s279
      %p281 = scmp.eq.s32.totalorder %s280, 0
      %s283 = sadd.s32 %s282, 1
      %s284 = scalar_select %p281, %s282, %s283
      %p287 = pneg %p281
      %p288 = scmp.eq.s32.totalorder %s31, 1
      %p289 = por %p287, %p288
      %p290 = scmp.ne.s32.totalorder %s282, %s285
      %p291 = scmp.eq.s32.totalorder %s31, 0
      %p292 = por %p290, %p291
      %p293 = scmp.ne.s32.totalorder %s282, %s285
      %p294 = scmp.eq.s32.totalorder %s36, 1
      %p295 = por %p293, %p294
      %p296 = scmp.ne.s32.totalorder %s285, %s286
      %p297 = scmp.eq.s32.totalorder %s36, 0
      %p298 = por %p296, %p297
      %p299 = scmp.ne.s32.totalorder %s285, %s286
      %p300 = scmp.eq.s32.totalorder %s37, 1
      %p301 = por %p299, %p300
      %p303 = scmp.ne.s32.totalorder %s286, %s302
      %p304 = scmp.eq.s32.totalorder %s37, 0
      %p305 = por %p303, %p304
      %s306 = ssub.s32 %s38, %s50
      %s307 = ssub.s32 %s39, %s46
      %s308 = sor.u32 %s306, %s307
      %p309 = scmp.eq.s32.totalorder %s308, 0
      %s311 = sadd.s32 %s310, 1
      %s312 = scalar_select %p309, %s310, %s311
      %p315 = pneg %p309
      %p316 = scmp.eq.s32.totalorder %s31, 1
      %p317 = por %p315, %p316
      %p318 = scmp.ne.s32.totalorder %s310, %s313
      %p319 = scmp.eq.s32.totalorder %s31, 0
      %p320 = por %p318, %p319
      %p321 = scmp.ne.s32.totalorder %s310, %s313
      %p322 = scmp.eq.s32.totalorder %s36, 1
      %p323 = por %p321, %p322
      %p324 = scmp.ne.s32.totalorder %s313, %s314
      %p325 = scmp.eq.s32.totalorder %s36, 0
      %p326 = por %p324, %p325
      %p327 = scmp.ne.s32.totalorder %s313, %s314
      %p328 = scmp.eq.s32.totalorder %s37, 1
      %p329 = por %p327, %p328
      %p331 = scmp.ne.s32.totalorder %s314, %s330
      %p332 = scmp.eq.s32.totalorder %s37, 0
      %p333 = por %p331, %p332
      %p334 = scmp.le.s32.totalorder 1, %s31
      %p335 = scmp.lt.s32.totalorder %s31, 3
      %p336 = pnand %p334, %p335
      %p337 = pneg %p336
      // Predicated region
      $region9: #{tpu_custom_call.1} parent=5 // pred_check
        _
      $region10: #{tpu_custom_call.1} parent=5 // pred_check_branch
        %339 = sbr.rel (%p336) target = $region12
      $region11: #{tpu_custom_call.1} parent=5 // pred_region
        %s340 = ssub.s32 %s31, 1
        // Predicated region
        $region13: #{tpu_custom_call.1} parent=11 // pred_check
          %p341 = pneg %p64
        $region14: #{tpu_custom_call.1} parent=11 // pred_check_branch
          %343 = sbr.rel (%p341) target = $region16
        $region15: #{tpu_custom_call.1} parent=11 // pred_region
          %s345 = ssub.s32 16, 16
          %346 = vsyncadd [#allocation7], %s345
          %349 = dma.hbm_to_smem %s0, 16, [#allocation4], [#allocation7]
        $region16: #{tpu_custom_call.1} parent=11 // pred_fallthru
          _
        // Predicated region
        $region17: #{tpu_custom_call.1} parent=11 // pred_check
          %p350 = pneg %p165
        $region18: #{tpu_custom_call.1} parent=11 // pred_check_branch
          %352 = sbr.rel (%p350) target = $region20
        $region19: #{tpu_custom_call.1} parent=11 // pred_region
          %s354 = ssub.s32 1536, 1536
          %355 = vsyncadd [#allocation13], %s354
          %s356 = sshll.u32 [#allocation12], 4
          %s357 = int_to_ptr.vmem [resolvable:$true] %s356
          %362 = dma.hbm_to_vmem [thread:$0]  %s4, 1536, %s357, [#allocation13], 128, 128, 8
        $region20: #{tpu_custom_call.1} parent=11 // pred_fallthru
          _
        // Predicated region
        $region21: #{tpu_custom_call.1} parent=11 // pred_check
          %p363 = pneg %p186
        $region22: #{tpu_custom_call.1} parent=11 // pred_check_branch
          %365 = sbr.rel (%p363) target = $region24
        $region23: #{tpu_custom_call.1} parent=11 // pred_region
          _
        $region24: #{tpu_custom_call.1} parent=11 // pred_fallthru
          _
      $region12: #{tpu_custom_call.1} parent=5 // pred_fallthru
        _
      %p366 = scmp.lt.s32.totalorder %s31, 2
      // Predicated region
      $region25: #{tpu_custom_call.1} parent=5 // pred_check
        %p367 = pneg %p366
      $region26: #{tpu_custom_call.1} parent=5 // pred_check_branch
        %369 = sbr.rel (%p367) target = $region28
      $region27: #{tpu_custom_call.1} parent=5 // pred_region
        // Predicated region
        $region29: #{tpu_custom_call.1} parent=27 // pred_check
          %p370 = pneg %p86
        $region30: #{tpu_custom_call.1} parent=27 // pred_check_branch
          %372 = sbr.rel (%p370) target = $region32
        $region31: #{tpu_custom_call.1} parent=27 // pred_region
          %s373 = sand.u32 %s31, 1
          %s374 = scalar_lea.sflag [#allocation5], %s373
          %s375 = sand.u32 %s76, 1
          %s376 = smul.addr %s375, 8
          %s377 = scalar_lea.vmem [#allocation8], %s376
          %s379 = ssub.s32 128, 128
          %380 = vsyncadd %s374, %s379
          %s381 = sadd.s32 %s39, %s38
          %s382 = smul.addr %s381, 128
          %s383 = scalar_lea.hbm %s1, %s382
          %s385 = sshll.u32 %s377, 4
          %s386 = int_to_ptr.vmem [resolvable:$true] %s385
          %388 = dma.hbm_to_vmem [thread:$0]  %s383, 128, %s386, %s374
        $region32: #{tpu_custom_call.1} parent=27 // pred_fallthru
          _
        // Predicated region
        $region33: #{tpu_custom_call.1} parent=27 // pred_check
          %p389 = pneg %p112
        $region34: #{tpu_custom_call.1} parent=27 // pred_check_branch
          %391 = sbr.rel (%p389) target = $region36
        $region35: #{tpu_custom_call.1} parent=27 // pred_region
          %s392 = sand.u32 %s31, 1
          %s393 = scalar_lea.sflag [#allocation10], %s392
          %s394 = sand.u32 %s102, 1
          %s395 = smul.addr %s394, 8
          %s396 = scalar_lea.vmem [#allocation9], %s395
          %s398 = ssub.s32 128, 128
          %399 = vsyncadd %s393, %s398
          %s400 = smul.addr %s38, 128
          %s401 = scalar_lea.hbm %s2, %s400
          %s403 = sshll.u32 %s396, 4
          %s404 = int_to_ptr.vmem [resolvable:$true] %s403
          %406 = dma.hbm_to_vmem [thread:$0]  %s401, 128, %s404, %s393
        $region36: #{tpu_custom_call.1} parent=27 // pred_fallthru
          _
        // Predicated region
        $region37: #{tpu_custom_call.1} parent=27 // pred_check
          %p407 = pneg %p138
        $region38: #{tpu_custom_call.1} parent=27 // pred_check_branch
          %409 = sbr.rel (%p407) target = $region40
        $region39: #{tpu_custom_call.1} parent=27 // pred_region
          %s410 = sand.u32 %s31, 1
          %s411 = scalar_lea.sflag [#allocation10], %s410
          %s412 = sand.u32 %s128, 1
          %s413 = smul.addr %s412, 8
          %s414 = scalar_lea.vmem [#allocation11], %s413
          %s416 = ssub.s32 128, 128
          %417 = vsyncadd %s411, %s416
          %s418 = smul.addr %s38, 128
          %s419 = scalar_lea.hbm %s3, %s418
          %s421 = sshll.u32 %s414, 4
          %s422 = int_to_ptr.vmem [resolvable:$true] %s421
          %424 = dma.hbm_to_vmem [thread:$0]  %s419, 128, %s422, %s411
        $region40: #{tpu_custom_call.1} parent=27 // pred_fallthru
          _
        // Predicated region
        $region41: #{tpu_custom_call.1} parent=27 // pred_check
          %p425 = pneg %p208
        $region42: #{tpu_custom_call.1} parent=27 // pred_check_branch
          %427 = sbr.rel (%p425) target = $region44
        $region43: #{tpu_custom_call.1} parent=27 // pred_region
          %s428 = sand.u32 %s31, 1
          %s429 = scalar_lea.sflag [#allocation5], %s428
          %s430 = sand.u32 %s198, 1
          %s431 = smul.addr %s430, 8
          %s432 = scalar_lea.vmem [#allocation14], %s431
          %s434 = ssub.s32 128, 128
          %435 = vsyncadd %s429, %s434
          %s436 = sadd.s32 %s39, %s38
          %s437 = smul.addr %s436, 128
          %s438 = scalar_lea.hbm %s6, %s437
          %s440 = sshll.u32 %s432, 4
          %s441 = int_to_ptr.vmem [resolvable:$true] %s440
          %443 = dma.hbm_to_vmem [thread:$0]  %s438, 128, %s441, %s429
        $region44: #{tpu_custom_call.1} parent=27 // pred_fallthru
          _
        // Predicated region
        $region45: #{tpu_custom_call.1} parent=27 // pred_check
          %p444 = pneg %p236
        $region46: #{tpu_custom_call.1} parent=27 // pred_check_branch
          %446 = sbr.rel (%p444) target = $region48
        $region47: #{tpu_custom_call.1} parent=27 // pred_region
          %s447 = sand.u32 %s31, 1
          %s448 = scalar_lea.sflag [#allocation10], %s447
          %s449 = sand.u32 %s226, 1
          %s450 = smul.addr %s449, 8
          %s451 = scalar_lea.vmem [#allocation15], %s450
          %s453 = ssub.s32 128, 128
          %454 = vsyncadd %s448, %s453
          %s455 = sadd.s32 %s39, %s38
          %s456 = smul.addr %s455, 128
          %s457 = scalar_lea.hbm %s7, %s456
          %s459 = sshll.u32 %s451, 4
          %s460 = int_to_ptr.vmem [resolvable:$true] %s459
          %462 = dma.hbm_to_vmem [thread:$0]  %s457, 128, %s460, %s448
        $region48: #{tpu_custom_call.1} parent=27 // pred_fallthru
          _
        // Predicated region
        $region49: #{tpu_custom_call.1} parent=27 // pred_check
          %p463 = pneg %p264
        $region50: #{tpu_custom_call.1} parent=27 // pred_check_branch
          %465 = sbr.rel (%p463) target = $region52
        $region51: #{tpu_custom_call.1} parent=27 // pred_region
          %p466 = scmp.lt.s32.totalorder %s38, 1
          %s467 = scalar_select %p466, %s38, 1
          %p468 = scmp.lt.s32.totalorder %s39, 0
          %s469 = scalar_select %p468, %s39, 0
          %s470 = sadd.s32 %s469, %s467
          %s471 = smul.addr %s470, 2
          %s472 = scalar_lea.vmem %s8, %s471
        $region52: #{tpu_custom_call.1} parent=27 // pred_fallthru
          _
      $region28: #{tpu_custom_call.1} parent=5 // pred_fallthru
        _
      %p473 = scmp.le.s32.totalorder 1, %s31
      %p474 = scmp.lt.s32.totalorder %s31, 3
      %p475 = pnand %p473, %p474
      %p476 = pneg %p475
      // Predicated region
      $region53: #{tpu_custom_call.1} parent=5 // pred_check
        _
      $region54: #{tpu_custom_call.1} parent=5 // pred_check_branch
        %478 = sbr.rel (%p475) target = $region56
      $region55: #{tpu_custom_call.1} parent=5 // pred_region
        %s479 = ssub.s32 %s31, 1
        // Predicated region
        $region57: #{tpu_custom_call.1} parent=55 // pred_check
          %p480 = pneg %p64
        $region58: #{tpu_custom_call.1} parent=55 // pred_check_branch
          %482 = sbr.rel (%p480) target = $region60
        $region59: #{tpu_custom_call.1} parent=55 // pred_region
          %483 = dma.done [#allocation7], 16
        $region60: #{tpu_custom_call.1} parent=55 // pred_fallthru
          _
        %s484 = sand.u32 %s36, 1
        %s485 = scalar_lea.sflag [#allocation5], %s484
        %s486 = sand.u32 %s79, 1
        %s487 = smul.addr %s486, 8
        %s488 = scalar_lea.vmem [#allocation8], %s487
        // Predicated region
        $region61: #{tpu_custom_call.1} parent=55 // pred_check
          %p489 = pneg %p92
        $region62: #{tpu_custom_call.1} parent=55 // pred_check_branch
          %491 = sbr.rel (%p489) target = $region64
        $region63: #{tpu_custom_call.1} parent=55 // pred_region
          %492 = dma.done %s485, 128
        $region64: #{tpu_custom_call.1} parent=55 // pred_fallthru
          _
        %s493 = sand.u32 %s36, 1
        %s494 = scalar_lea.sflag [#allocation10], %s493
        %s495 = sand.u32 %s105, 1
        %s496 = smul.addr %s495, 8
        %s497 = scalar_lea.vmem [#allocation9], %s496
        // Predicated region
        $region65: #{tpu_custom_call.1} parent=55 // pred_check
          %p498 = pneg %p118
        $region66: #{tpu_custom_call.1} parent=55 // pred_check_branch
          %500 = sbr.rel (%p498) target = $region68
        $region67: #{tpu_custom_call.1} parent=55 // pred_region
          %501 = dma.done %s494, 128
        $region68: #{tpu_custom_call.1} parent=55 // pred_fallthru
          _
        %s502 = sand.u32 %s36, 1
        %s503 = scalar_lea.sflag [#allocation10], %s502
        %s504 = sand.u32 %s131, 1
        %s505 = smul.addr %s504, 8
        %s506 = scalar_lea.vmem [#allocation11], %s505
        // Predicated region
        $region69: #{tpu_custom_call.1} parent=55 // pred_check
          %p507 = pneg %p144
        $region70: #{tpu_custom_call.1} parent=55 // pred_check_branch
          %509 = sbr.rel (%p507) target = $region72
        $region71: #{tpu_custom_call.1} parent=55 // pred_region
          %510 = dma.done %s503, 128
        $region72: #{tpu_custom_call.1} parent=55 // pred_fallthru
          _
        // Predicated region
        $region73: #{tpu_custom_call.1} parent=55 // pred_check
          %p511 = pneg %p165
        $region74: #{tpu_custom_call.1} parent=55 // pred_check_branch
          %513 = sbr.rel (%p511) target = $region76
        $region75: #{tpu_custom_call.1} parent=55 // pred_region
          %514 = dma.done [#allocation13], 1536
        $region76: #{tpu_custom_call.1} parent=55 // pred_fallthru
          _
        %s515 = sand.u32 %s36, 1
        %s516 = scalar_lea.sflag [#allocation5], %s515
        %s517 = sand.u32 %s201, 1
        %s518 = smul.addr %s517, 8
        %s519 = scalar_lea.vmem [#allocation14], %s518
        // Predicated region
        $region77: #{tpu_custom_call.1} parent=55 // pred_check
          %p520 = pneg %p214
        $region78: #{tpu_custom_call.1} parent=55 // pred_check_branch
          %522 = sbr.rel (%p520) target = $region80
        $region79: #{tpu_custom_call.1} parent=55 // pred_region
          %523 = dma.done %s516, 128
        $region80: #{tpu_custom_call.1} parent=55 // pred_fallthru
          _
        %s524 = sand.u32 %s36, 1
        %s525 = scalar_lea.sflag [#allocation10], %s524
        %s526 = sand.u32 %s229, 1
        %s527 = smul.addr %s526, 8
        %s528 = scalar_lea.vmem [#allocation15], %s527
        // Predicated region
        $region81: #{tpu_custom_call.1} parent=55 // pred_check
          %p529 = pneg %p242
        $region82: #{tpu_custom_call.1} parent=55 // pred_check_branch
          %531 = sbr.rel (%p529) target = $region84
        $region83: #{tpu_custom_call.1} parent=55 // pred_region
          %532 = dma.done %s525, 128
        $region84: #{tpu_custom_call.1} parent=55 // pred_fallthru
          _
        %533 = sfence
        %p534 = pneg %p64
        %p535 = pneg %p61
        %s536 = sand.u32 %s36, 1
        %s537 = scalar_lea.sflag [#allocation5], %s536
        %s538 = sand.u32 %s79, 1
        %s539 = smul.addr %s538, 8
        %s540 = scalar_lea.vmem [#allocation8], %s539
        %p541 = pneg %p92
        %p542 = pneg %p89
        %s543 = sand.u32 %s36, 1
        %s544 = scalar_lea.sflag [#allocation10], %s543
        %s545 = sand.u32 %s105, 1
        %s546 = smul.addr %s545, 8
        %s547 = scalar_lea.vmem [#allocation9], %s546
        %p548 = pneg %p118
        %p549 = pneg %p115
        %s550 = sand.u32 %s36, 1
        %s551 = scalar_lea.sflag [#allocation10], %s550
        %s552 = sand.u32 %s131, 1
        %s553 = smul.addr %s552, 8
        %s554 = scalar_lea.vmem [#allocation11], %s553
        %p555 = pneg %p144
        %p556 = pneg %p141
        %p557 = pneg %p165
        %p558 = pneg %p162
        %p559 = pneg %p186
        %p560 = pneg %p183
        %s561 = sand.u32 %s36, 1
        %s562 = scalar_lea.sflag [#allocation5], %s561
        %s563 = sand.u32 %s201, 1
        %s564 = smul.addr %s563, 8
        %s565 = scalar_lea.vmem [#allocation14], %s564
        %p566 = pneg %p214
        %p567 = pneg %p211
        %s568 = sand.u32 %s36, 1
        %s569 = scalar_lea.sflag [#allocation10], %s568
        %s570 = sand.u32 %s229, 1
        %s571 = smul.addr %s570, 8
        %s572 = scalar_lea.vmem [#allocation15], %s571
        %p573 = pneg %p242
        %p574 = pneg %p239
        %p575 = scmp.lt.s32.totalorder %s40, 1
        %s576 = scalar_select %p575, %s40, 1
        %p577 = scmp.lt.s32.totalorder %s41, 0
        %s578 = scalar_select %p577, %s41, 0
        %s579 = sadd.s32 %s578, %s576
        %s580 = smul.addr %s579, 2
        %s581 = scalar_lea.vmem %s8, %s580
        %p582 = pneg %p270
        %p583 = pneg %p267
        %p584 = pneg %p298
        %p585 = pneg %p295
        %s586 = sand.u32 %s285, 1
        %s587 = scalar_lea.sflag [#allocation6], %s586
        %s588 = sand.u32 %s285, 1
        %s589 = smul.addr %s588, 8
        %s590 = scalar_lea.vmem [#allocation16], %s589
        %p591 = pneg %p326
        %p592 = pneg %p323
        %s593 = sand.u32 %s313, 1
        %s594 = scalar_lea.sflag [#allocation18], %s593
        %s595 = sand.u32 %s313, 1
        %s596 = smul.addr %s595, 32
        %s597 = scalar_lea.vmem [#allocation17], %s596
        %p598 = scmp.lt.s32.totalorder %s40, 1
        %s599 = scalar_select %p598, %s40, 1
        %p600 = scmp.lt.s32.totalorder %s41, 0
        %s601 = scalar_select %p600, %s41, 0
        %s602 = sadd.s32 %s601, %s599
        %s603 = smul.addr %s602, 2
        %s604 = scalar_lea.vmem %s8, %s603
        %s605 = sld [smem:[#allocation4]]
        %s606 = sld [smem:[#allocation4 + $0x1]]
        %s607 = sld [smem:[#allocation4 + $0x2]]
        %p608 = scmp.eq.s32.totalorder %s41, 0
        // Predicated region
        $region85: #{tpu_custom_call.1} parent=55 // pred_check
          %p609 = pneg %p608
        $region86: #{tpu_custom_call.1} parent=55 // pred_check_branch
          %611 = sbr.rel (%p609) target = $region88
        $region87: #{tpu_custom_call.1} parent=55 // pred_region
          %v612 = vld [vmem:[%s497] sm:$0xff]
          %s613 = scalar_lea.vmem [#allocation12], 32
          %v614 = vld [vmem:[%s613] sm:$0xff]
          %v615 = vld [vmem:[%s613 + $0x8] sm:$0xff]
          %v616 = vld [vmem:[%s613 + $0x10] sm:$0xff]
          %v617 = vld [vmem:[%s613 + $0x18] sm:$0xff]
          %s618 = scalar_lea.vmem %s5, 1
          %v619 = vld [vmem:[%s618] sm:$0x1]
          %v621 = vlaneseq
          %v622 = vshrl.u32 %v621, 7
          %v623 = vsub.s32 0, %v622
          %v624 = vrot.slane %v619, %v623
          %vm626 = vcmask 261120
          %v628 = vsel %vm626, %v612, 0
          %630 = vmatprep.subr.mxu0 0.0
          %631 = vmatpush1.msra.mxu0 0.0
          %632 = vmatprep.subr.mxu0 0.0
          %633 = vmatpush1.msra.mxu0 0.0
          %634 = vmatprep.subr.mxu0 0.0
          %635 = vmatpush1.msra.mxu0 0.0
          %636 = vmatprep.subr.mxu0 0.0
          %637 = vmatpush1.msra.mxu0 0.0
          %638 = vmatprep.subr.mxu0 0.0
          %639 = vmatpush1.msra.mxu0 0.0
          %640 = vmatprep.subr.mxu0 0.0
          %641 = vmatpush1.msra.mxu0 0.0
          %642 = vmatprep.subr.mxu0 0.0
          %643 = vmatpush1.msra.mxu0 0.0
          %644 = vmatprep.subr.mxu0 0.0
          %645 = vmatpush1.msra.mxu0 0.0
          %646 = vmatprep.subr.mxu0 0.0
          %647 = vmatpush1.msra.mxu0 0.0
          %648 = vmatprep.subr.mxu0 0.0
          %649 = vmatpush1.msra.mxu0 0.0
          %650 = vmatprep.subr.mxu0 0.0
          %651 = vmatpush1.msra.mxu0 0.0
          %652 = vmatprep.subr.mxu0 0.0
          %653 = vmatpush1.msra.mxu0 0.0
          %654 = vmatprep.subr.mxu0 0.0
          %655 = vmatpush1.msra.mxu0 %v617
          %656 = vmatprep.subr.mxu0 0.0
          %657 = vmatpush1.msra.mxu0 %v616
          %658 = vmatprep.subr.mxu0 0.0
          %659 = vmatpush1.msra.mxu0 %v615
          %660 = vmatprep.subr.mxu0 0.0
          %661 = vmatpush1.msra.mxu0 %v614
          %662 = vmatprep.subr.mxu0 0.0
          %663 = vmatpush2.msra.mxu0 0.0
          %664 = vmatprep.subr.mxu0 0.0
          %665 = vmatpush2.msra.mxu0 0.0
          %666 = vmatprep.subr.mxu0 0.0
          %667 = vmatpush2.msra.mxu0 0.0
          %668 = vmatprep.subr.mxu0 0.0
          %669 = vmatpush2.msra.mxu0 0.0
          %670 = vmatprep.subr.mxu0 0.0
          %671 = vmatpush2.msra.mxu0 0.0
          %672 = vmatprep.subr.mxu0 0.0
          %673 = vmatpush2.msra.mxu0 0.0
          %674 = vmatprep.subr.mxu0 0.0
          %675 = vmatpush2.msra.mxu0 0.0
          %676 = vmatprep.subr.mxu0 0.0
          %677 = vmatpush2.msra.mxu0 0.0
          %678 = vmatprep.subr.mxu0 0.0
          %679 = vmatpush2.msra.mxu0 0.0
          %680 = vmatprep.subr.mxu0 0.0
          %681 = vmatpush2.msra.mxu0 0.0
          %682 = vmatprep.subr.mxu0 0.0
          %683 = vmatpush2.msra.mxu0 0.0
          %684 = vmatprep.subr.mxu0 0.0
          %685 = vmatpush2.msra.mxu0 0.0
          %686 = vmatprep.subr.mxu0 0.0
          %687 = vmatpush2.msra.mxu0 0.0
          %688 = vmatprep.subr.mxu0 0.0
          %689 = vmatpush2.msra.mxu0 0.0
          %690 = vmatprep.subr.mxu0 0.0
          %691 = vmatpush2.msra.mxu0 0.0
          %692 = vmatprep.subr.mxu0 0.0
          %693 = vmatpush2.msra.mxu0 0.0
          %694 = vmatprep.mubr.f32.mxu0 0.0
          %695 = vmatmul.mubr.f32.gmra.mxu0 %v628
          %v696 = vpop.f32.mrf.mxu0
          %v697 = vadd.f32 %v624, %v696
          %v698 = vpop.f32.mrf.mxu0
          %699 = vdwg.mxu0
          %v700 = vld [vmem:[%s506] sm:$0xff]
          %s701 = scalar_lea.vmem [#allocation12], 64
          %v702 = vld [vmem:[%s701] sm:$0xff]
          %v703 = vld [vmem:[%s701 + $0x8] sm:$0xff]
          %v704 = vld [vmem:[%s701 + $0x10] sm:$0xff]
          %v705 = vld [vmem:[%s701 + $0x18] sm:$0xff]
          %s706 = scalar_lea.vmem %s5, 2
          %v707 = vld [vmem:[%s706] sm:$0x1]
          %v709 = vlaneseq
          %v710 = vshrl.u32 %v709, 7
          %v711 = vsub.s32 0, %v710
          %v712 = vrot.slane %v707, %v711
          %v715 = vsel %vm626, %v700, 0
          %717 = vmatprep.subr.mxu0 0.0
          %718 = vmatpush1.msra.mxu0 0.0
          %719 = vmatprep.subr.mxu0 0.0
          %720 = vmatpush1.msra.mxu0 0.0
          %721 = vmatprep.subr.mxu0 0.0
          %722 = vmatpush1.msra.mxu0 0.0
          %723 = vmatprep.subr.mxu0 0.0
          %724 = vmatpush1.msra.mxu0 0.0
          %725 = vmatprep.subr.mxu0 0.0
          %726 = vmatpush1.msra.mxu0 0.0
          %727 = vmatprep.subr.mxu0 0.0
          %728 = vmatpush1.msra.mxu0 0.0
          %729 = vmatprep.subr.mxu0 0.0
          %730 = vmatpush1.msra.mxu0 0.0
          %731 = vmatprep.subr.mxu0 0.0
          %732 = vmatpush1.msra.mxu0 0.0
          %733 = vmatprep.subr.mxu0 0.0
          %734 = vmatpush1.msra.mxu0 0.0
          %735 = vmatprep.subr.mxu0 0.0
          %736 = vmatpush1.msra.mxu0 0.0
          %737 = vmatprep.subr.mxu0 0.0
          %738 = vmatpush1.msra.mxu0 0.0
          %739 = vmatprep.subr.mxu0 0.0
          %740 = vmatpush1.msra.mxu0 0.0
          %741 = vmatprep.subr.mxu0 0.0
          %742 = vmatpush1.msra.mxu0 %v705
          %743 = vmatprep.subr.mxu0 0.0
          %744 = vmatpush1.msra.mxu0 %v704
          %745 = vmatprep.subr.mxu0 0.0
          %746 = vmatpush1.msra.mxu0 %v703
          %747 = vmatprep.subr.mxu0 0.0
          %748 = vmatpush1.msra.mxu0 %v702
          %749 = vmatprep.subr.mxu0 0.0
          %750 = vmatpush2.msra.mxu0 0.0
          %751 = vmatprep.subr.mxu0 0.0
          %752 = vmatpush2.msra.mxu0 0.0
          %753 = vmatprep.subr.mxu0 0.0
          %754 = vmatpush2.msra.mxu0 0.0
          %755 = vmatprep.subr.mxu0 0.0
          %756 = vmatpush2.msra.mxu0 0.0
          %757 = vmatprep.subr.mxu0 0.0
          %758 = vmatpush2.msra.mxu0 0.0
          %759 = vmatprep.subr.mxu0 0.0
          %760 = vmatpush2.msra.mxu0 0.0
          %761 = vmatprep.subr.mxu0 0.0
          %762 = vmatpush2.msra.mxu0 0.0
          %763 = vmatprep.subr.mxu0 0.0
          %764 = vmatpush2.msra.mxu0 0.0
          %765 = vmatprep.subr.mxu0 0.0
          %766 = vmatpush2.msra.mxu0 0.0
          %767 = vmatprep.subr.mxu0 0.0
          %768 = vmatpush2.msra.mxu0 0.0
          %769 = vmatprep.subr.mxu0 0.0
          %770 = vmatpush2.msra.mxu0 0.0
          %771 = vmatprep.subr.mxu0 0.0
          %772 = vmatpush2.msra.mxu0 0.0
          %773 = vmatprep.subr.mxu0 0.0
          %774 = vmatpush2.msra.mxu0 0.0
          %775 = vmatprep.subr.mxu0 0.0
          %776 = vmatpush2.msra.mxu0 0.0
          %777 = vmatprep.subr.mxu0 0.0
          %778 = vmatpush2.msra.mxu0 0.0
          %779 = vmatprep.subr.mxu0 0.0
          %780 = vmatpush2.msra.mxu0 0.0
          %781 = vmatprep.mubr.f32.mxu0 0.0
          %782 = vmatmul.mubr.f32.gmra.mxu0 %v715
          %v783 = vpop.f32.mrf.mxu0
          %v784 = vadd.f32 %v712, %v783
          %v785 = vpop.f32.mrf.mxu0
          %786 = vdwg.mxu0
          %787 = vst.msk [vmem:[#allocation2] sm:$0xff] %vm626, %v697
          %788 = vst.msk [vmem:[#allocation3] sm:$0xff] %vm626, %v784
        $region88: #{tpu_custom_call.1} parent=55 // pred_fallthru
          _
        %v789 = vld [vmem:[%s488] sm:$0xff]
        %v790 = vld [vmem:[#allocation12] sm:$0xff]
        %v791 = vld [vmem:[#allocation12 + $0x8] sm:$0xff]
        %v792 = vld [vmem:[#allocation12 + $0x10] sm:$0xff]
        %v793 = vld [vmem:[#allocation12 + $0x18] sm:$0xff]
        %v794 = vld [vmem:[%s5] sm:$0x1]
        %v796 = vlaneseq
        %v797 = vshrl.u32 %v796, 7
        %v798 = vsub.s32 0, %v797
        %v799 = vrot.slane %v794, %v798
        %vm801 = vcmask 261120
        %v803 = vsel %vm801, %v789, 0
        %805 = vmatprep.subr.mxu0 0.0
        %806 = vmatpush1.msra.mxu0 0.0
        %807 = vmatprep.subr.mxu0 0.0
        %808 = vmatpush1.msra.mxu0 0.0
        %809 = vmatprep.subr.mxu0 0.0
        %810 = vmatpush1.msra.mxu0 0.0
        %811 = vmatprep.subr.mxu0 0.0
        %812 = vmatpush1.msra.mxu0 0.0
        %813 = vmatprep.subr.mxu0 0.0
        %814 = vmatpush1.msra.mxu0 0.0
        %815 = vmatprep.subr.mxu0 0.0
        %816 = vmatpush1.msra.mxu0 0.0
        %817 = vmatprep.subr.mxu0 0.0
        %818 = vmatpush1.msra.mxu0 0.0
        %819 = vmatprep.subr.mxu0 0.0
        %820 = vmatpush1.msra.mxu0 0.0
        %821 = vmatprep.subr.mxu0 0.0
        %822 = vmatpush1.msra.mxu0 0.0
        %823 = vmatprep.subr.mxu0 0.0
        %824 = vmatpush1.msra.mxu0 0.0
        %825 = vmatprep.subr.mxu0 0.0
        %826 = vmatpush1.msra.mxu0 0.0
        %827 = vmatprep.subr.mxu0 0.0
        %828 = vmatpush1.msra.mxu0 0.0
        %829 = vmatprep.subr.mxu0 0.0
        %830 = vmatpush1.msra.mxu0 %v793
        %831 = vmatprep.subr.mxu0 0.0
        %832 = vmatpush1.msra.mxu0 %v792
        %833 = vmatprep.subr.mxu0 0.0
        %834 = vmatpush1.msra.mxu0 %v791
        %835 = vmatprep.subr.mxu0 0.0
        %836 = vmatpush1.msra.mxu0 %v790
        %837 = vmatprep.subr.mxu0 0.0
        %838 = vmatpush2.msra.mxu0 0.0
        %839 = vmatprep.subr.mxu0 0.0
        %840 = vmatpush2.msra.mxu0 0.0
        %841 = vmatprep.subr.mxu0 0.0
        %842 = vmatpush2.msra.mxu0 0.0
        %843 = vmatprep.subr.mxu0 0.0
        %844 = vmatpush2.msra.mxu0 0.0
        %845 = vmatprep.subr.mxu0 0.0
        %846 = vmatpush2.msra.mxu0 0.0
        %847 = vmatprep.subr.mxu0 0.0
        %848 = vmatpush2.msra.mxu0 0.0
        %849 = vmatprep.subr.mxu0 0.0
        %850 = vmatpush2.msra.mxu0 0.0
        %851 = vmatprep.subr.mxu0 0.0
        %852 = vmatpush2.msra.mxu0 0.0
        %853 = vmatprep.subr.mxu0 0.0
        %854 = vmatpush2.msra.mxu0 0.0
        %855 = vmatprep.subr.mxu0 0.0
        %856 = vmatpush2.msra.mxu0 0.0
        %857 = vmatprep.subr.mxu0 0.0
        %858 = vmatpush2.msra.mxu0 0.0
        %859 = vmatprep.subr.mxu0 0.0
        %860 = vmatpush2.msra.mxu0 0.0
        %861 = vmatprep.subr.mxu0 0.0
        %862 = vmatpush2.msra.mxu0 0.0
        %863 = vmatprep.subr.mxu0 0.0
        %864 = vmatpush2.msra.mxu0 0.0
        %865 = vmatprep.subr.mxu0 0.0
        %866 = vmatpush2.msra.mxu0 0.0
        %867 = vmatprep.subr.mxu0 0.0
        %868 = vmatpush2.msra.mxu0 0.0
        %869 = vmatprep.mubr.f32.mxu0 0.0
        %870 = vmatmul.mubr.f32.gmra.mxu0 %v803
        %v871 = vpop.f32.mrf.mxu0
        %v872 = vadd.f32 %v799, %v871
        %v873 = vpop.f32.mrf.mxu0
        %874 = vdwg.mxu0
        %v875 = vld [vmem:[#allocation2] sm:$0xff]
        %v876 = vld [vmem:[#allocation3] sm:$0xff]
        %v877 = vld [vmem:[%s604] sm:$0x3]
        %v878 = vunpack.c.0.s8 %v877
        %v879 = vcvt.s32.f32 %v878
        %v880 = vmul.f32 %v879, -1e+32
        %v881 = vmul.f32 %v879, -100000.0
        %v882 = vld [vmem:[%s519] sm:$0xff]
        %v883 = vadd.f32 %v882, %v881
        %vm884 = vcmask 64512
        %v885 = vsel %vm884, %v883, -inf
        %886 = vmax.xlane.f32.xlu0 %v885
        %v887 = vpop.xlane.xlu0 %886
        %v888 = vsub.f32 %v883, %v887
        %v889 = vmul.f32 %v888, 1.442695
        %v890 = vpow.pop %v889
        %v891 = vsel %vm884, %v890, 0.0
        %892 = vadd.xlane.f32.xlu0 %v891
        %v893 = vpop.xlane.xlu0 %892
        %v894 = vrcp.pop %v893
        %v895 = vmul.f32 %v890, %v894
        %v896 = vld [vmem:[%s528] sm:$0xff]
        %v897 = vand.u32 2147483647, %v896
        %v898 = vsub.f32 0.0, %v897
        %v899 = vmul.f32 %v898, 1.442695
        %v900 = vpow.pop %v899
        %v901 = vadd.f32 %v900, %v881
        %v902 = vsel %vm884, %v901, -inf
        %903 = vmax.xlane.f32.xlu0 %v902
        %v904 = vpop.xlane.xlu0 %903
        %v905 = vsub.f32 %v901, %v904
        %v906 = vmul.f32 %v905, 1.442695
        %v907 = vpow.pop %v906
        %v908 = vsel %vm884, %v907, 0.0
        %909 = vadd.xlane.f32.xlu0 %v908
        %v910 = vpop.xlane.xlu0 %909
        %v911 = vrcp.pop %v910
        %v912 = vmul.f32 %v907, %v911
        %v913 = vlaneseq
        %v914 = vshrl.u32 %v913, 7
        %s915 = smul.u32 %s41, 8
        %v916 = vstv %s915
        %v917 = vadd.s32 %v914, %v916
        %vm918 = vcmp.eq.s32.totalorder %v917, 0
        %v919 = vstv %s605
        %v920 = vsel %vm918, 0.0, %v919
        %v921 = vstv %s606
        %v922 = vmul.f32 %v921, %v895
        %v923 = vstv %s607
        %v924 = vmul.f32 %v923, %v912
        %v925 = vadd.f32 %v922, %v924
        %v926 = vsel %vm918, 1, 0
        %vm927 = vcmp.eq.s32.totalorder %v926, 1
        %v928 = vsel %vm927, 0.0, %v925
        %v930 = vsel %vm884, %v872, 0
        %v933 = vsel %vm884, %v875, 0
        %935 = vmatprep.subr.mxu0 0.0
        %936 = vmatpush1.xpose.msra.mxu0 0.0
        %937 = vmatprep.subr.mxu0 0.0
        %938 = vmatpush1.xpose.msra.mxu0 0.0
        %939 = vmatprep.subr.mxu0 0.0
        %940 = vmatpush1.xpose.msra.mxu0 0.0
        %941 = vmatprep.subr.mxu0 0.0
        %942 = vmatpush1.xpose.msra.mxu0 0.0
        %943 = vmatprep.subr.mxu0 0.0
        %944 = vmatpush1.xpose.msra.mxu0 0.0
        %945 = vmatprep.subr.mxu0 0.0
        %946 = vmatpush1.xpose.msra.mxu0 0.0
        %947 = vmatprep.subr.mxu0 0.0
        %948 = vmatpush1.xpose.msra.mxu0 0.0
        %949 = vmatprep.subr.mxu0 0.0
        %950 = vmatpush1.xpose.msra.mxu0 0.0
        %951 = vmatprep.subr.mxu0 0.0
        %952 = vmatpush1.xpose.msra.mxu0 0.0
        %953 = vmatprep.subr.mxu0 0.0
        %954 = vmatpush1.xpose.msra.mxu0 0.0
        %955 = vmatprep.subr.mxu0 0.0
        %956 = vmatpush1.xpose.msra.mxu0 0.0
        %957 = vmatprep.subr.mxu0 0.0
        %958 = vmatpush1.xpose.msra.mxu0 0.0
        %959 = vmatprep.subr.mxu0 0.0
        %960 = vmatpush1.xpose.msra.mxu0 0.0
        %961 = vmatprep.subr.mxu0 0.0
        %962 = vmatpush1.xpose.msra.mxu0 0.0
        %963 = vmatprep.subr.mxu0 0.0
        %964 = vmatpush1.xpose.msra.mxu0 0.0
        %965 = vmatprep.subr.mxu0 0.0
        %966 = vmatpush1.xpose.msra.mxu0 %v933
        %967 = vmatprep.subr.mxu0 0.0
        %968 = vmatpush2.xpose.msra.mxu0 0.0
        %969 = vmatprep.subr.mxu0 0.0
        %970 = vmatpush2.xpose.msra.mxu0 0.0
        %971 = vmatprep.subr.mxu0 0.0
        %972 = vmatpush2.xpose.msra.mxu0 0.0
        %973 = vmatprep.subr.mxu0 0.0
        %974 = vmatpush2.xpose.msra.mxu0 0.0
        %975 = vmatprep.subr.mxu0 0.0
        %976 = vmatpush2.xpose.msra.mxu0 0.0
        %977 = vmatprep.subr.mxu0 0.0
        %978 = vmatpush2.xpose.msra.mxu0 0.0
        %979 = vmatprep.subr.mxu0 0.0
        %980 = vmatpush2.xpose.msra.mxu0 0.0
        %981 = vmatprep.subr.mxu0 0.0
        %982 = vmatpush2.xpose.msra.mxu0 0.0
        %983 = vmatprep.subr.mxu0 0.0
        %984 = vmatpush2.xpose.msra.mxu0 0.0
        %985 = vmatprep.subr.mxu0 0.0
        %986 = vmatpush2.xpose.msra.mxu0 0.0
        %987 = vmatprep.subr.mxu0 0.0
        %988 = vmatpush2.xpose.msra.mxu0 0.0
        %989 = vmatprep.subr.mxu0 0.0
        %990 = vmatpush2.xpose.msra.mxu0 0.0
        %991 = vmatprep.subr.mxu0 0.0
        %992 = vmatpush2.xpose.msra.mxu0 0.0
        %993 = vmatprep.subr.mxu0 0.0
        %994 = vmatpush2.xpose.msra.mxu0 0.0
        %995 = vmatprep.subr.mxu0 0.0
        %996 = vmatpush2.xpose.msra.mxu0 0.0
        %997 = vmatprep.subr.mxu0 0.0
        %998 = vmatpush2.xpose.msra.mxu0 0.0
        %999 = vmatprep.mubr.f32.mxu0 0.0
        %1000 = vmatmul.mubr.f32.gmra.mxu0 %v930
        %v1001 = vpop.f32.mrf.mxu0
        %v1002 = vadd.f32 0.0, %v1001
        %v1003 = vpop.f32.mrf.mxu0
        %1004 = vdwg.mxu0
        %v1005 = vmul.f32 %v1002, 0.35355338
        %v1006 = vadd.f32 %v1005, %v880
        %v1007 = vsel %vm884, %v1006, -inf
        %1008 = vmax.xlane.f32.xlu0 %v1007
        %v1009 = vpop.xlane.xlu0 %1008
        %v1010 = vsub.f32 %v1006, %v1009
        %v1011 = vmul.f32 %v1010, 1.442695
        %v1012 = vpow.pop %v1011
        %v1013 = vsel %vm884, %v1012, 0.0
        %1014 = vadd.xlane.f32.xlu0 %v1013
        %v1015 = vpop.xlane.xlu0 %1014
        %v1016 = vrcp.pop %v1015
        %v1017 = vmul.f32 %v1012, %v1016
        %v1018 = vmul.f32 %v920, %v1017
        %v1019 = vadd.f32 %v1018, %v928
        %1020 = vst.msk [vmem:[%s597] sm:$0xff] %vm884, %v1019
        %v1022 = vsel %vm884, %v1019, 0
        %1024 = vmatprep.subr.mxu0 0.0
        %1025 = vmatpush1.msra.mxu0 0.0
        %1026 = vmatprep.subr.mxu0 0.0
        %1027 = vmatpush1.msra.mxu0 0.0
        %1028 = vmatprep.subr.mxu0 0.0
        %1029 = vmatpush1.msra.mxu0 0.0
        %1030 = vmatprep.subr.mxu0 0.0
        %1031 = vmatpush1.msra.mxu0 0.0
        %1032 = vmatprep.subr.mxu0 0.0
        %1033 = vmatpush1.msra.mxu0 0.0
        %1034 = vmatprep.subr.mxu0 0.0
        %1035 = vmatpush1.msra.mxu0 0.0
        %1036 = vmatprep.subr.mxu0 0.0
        %1037 = vmatpush1.msra.mxu0 0.0
        %1038 = vmatprep.subr.mxu0 0.0
        %1039 = vmatpush1.msra.mxu0 0.0
        %1040 = vmatprep.subr.mxu0 0.0
        %1041 = vmatpush1.msra.mxu0 0.0
        %1042 = vmatprep.subr.mxu0 0.0
        %1043 = vmatpush1.msra.mxu0 0.0
        %1044 = vmatprep.subr.mxu0 0.0
        %1045 = vmatpush1.msra.mxu0 0.0
        %1046 = vmatprep.subr.mxu0 0.0
        %1047 = vmatpush1.msra.mxu0 0.0
        %1048 = vmatprep.subr.mxu0 0.0
        %1049 = vmatpush1.msra.mxu0 0.0
        %1050 = vmatprep.subr.mxu0 0.0
        %1051 = vmatpush1.msra.mxu0 0.0
        %1052 = vmatprep.subr.mxu0 0.0
        %1053 = vmatpush1.msra.mxu0 0.0
        %1054 = vmatprep.subr.mxu0 0.0
        %1055 = vmatpush1.msra.mxu0 %v876
        %1056 = vmatprep.subr.mxu0 0.0
        %1057 = vmatpush2.msra.mxu0 0.0
        %1058 = vmatprep.subr.mxu0 0.0
        %1059 = vmatpush2.msra.mxu0 0.0
        %1060 = vmatprep.subr.mxu0 0.0
        %1061 = vmatpush2.msra.mxu0 0.0
        %1062 = vmatprep.subr.mxu0 0.0
        %1063 = vmatpush2.msra.mxu0 0.0
        %1064 = vmatprep.subr.mxu0 0.0
        %1065 = vmatpush2.msra.mxu0 0.0
        %1066 = vmatprep.subr.mxu0 0.0
        %1067 = vmatpush2.msra.mxu0 0.0
        %1068 = vmatprep.subr.mxu0 0.0
        %1069 = vmatpush2.msra.mxu0 0.0
        %1070 = vmatprep.subr.mxu0 0.0
        %1071 = vmatpush2.msra.mxu0 0.0
        %1072 = vmatprep.subr.mxu0 0.0
        %1073 = vmatpush2.msra.mxu0 0.0
        %1074 = vmatprep.subr.mxu0 0.0
        %1075 = vmatpush2.msra.mxu0 0.0
        %1076 = vmatprep.subr.mxu0 0.0
        %1077 = vmatpush2.msra.mxu0 0.0
        %1078 = vmatprep.subr.mxu0 0.0
        %1079 = vmatpush2.msra.mxu0 0.0
        %1080 = vmatprep.subr.mxu0 0.0
        %1081 = vmatpush2.msra.mxu0 0.0
        %1082 = vmatprep.subr.mxu0 0.0
        %1083 = vmatpush2.msra.mxu0 0.0
        %1084 = vmatprep.subr.mxu0 0.0
        %1085 = vmatpush2.msra.mxu0 0.0
        %1086 = vmatprep.subr.mxu0 0.0
        %1087 = vmatpush2.msra.mxu0 0.0
        %1088 = vmatprep.mubr.f32.mxu0 0.0
        %1089 = vmatmul.mubr.f32.gmra.mxu0 %v1022
        %v1090 = vpop.f32.mrf.mxu0
        %v1091 = vadd.f32 0.0, %v1090
        %v1092 = vpop.f32.mrf.mxu0
        %1093 = vdwg.mxu0
        %1094 = vrot.lane.b32.xlu0 %v872, 120
        %v1095 = vpop.permute.xlu0 %1094
        %1096 = vrot.lane.b32.xlu0 %v875, 120
        %v1097 = vpop.permute.xlu0 %1096
        %v1098 = vsel %vm884, %v1095, 0
        %v1100 = vsel %vm884, %v1097, 0
        %1102 = vmatprep.subr.mxu0 0.0
        %1103 = vmatpush1.xpose.msra.mxu0 0.0
        %1104 = vmatprep.subr.mxu0 0.0
        %1105 = vmatpush1.xpose.msra.mxu0 0.0
        %1106 = vmatprep.subr.mxu0 0.0
        %1107 = vmatpush1.xpose.msra.mxu0 0.0
        %1108 = vmatprep.subr.mxu0 0.0
        %1109 = vmatpush1.xpose.msra.mxu0 0.0
        %1110 = vmatprep.subr.mxu0 0.0
        %1111 = vmatpush1.xpose.msra.mxu0 0.0
        %1112 = vmatprep.subr.mxu0 0.0
        %1113 = vmatpush1.xpose.msra.mxu0 0.0
        %1114 = vmatprep.subr.mxu0 0.0
        %1115 = vmatpush1.xpose.msra.mxu0 0.0
        %1116 = vmatprep.subr.mxu0 0.0
        %1117 = vmatpush1.xpose.msra.mxu0 0.0
        %1118 = vmatprep.subr.mxu0 0.0
        %1119 = vmatpush1.xpose.msra.mxu0 0.0
        %1120 = vmatprep.subr.mxu0 0.0
        %1121 = vmatpush1.xpose.msra.mxu0 0.0
        %1122 = vmatprep.subr.mxu0 0.0
        %1123 = vmatpush1.xpose.msra.mxu0 0.0
        %1124 = vmatprep.subr.mxu0 0.0
        %1125 = vmatpush1.xpose.msra.mxu0 0.0
        %1126 = vmatprep.subr.mxu0 0.0
        %1127 = vmatpush1.xpose.msra.mxu0 0.0
        %1128 = vmatprep.subr.mxu0 0.0
        %1129 = vmatpush1.xpose.msra.mxu0 0.0
        %1130 = vmatprep.subr.mxu0 0.0
        %1131 = vmatpush1.xpose.msra.mxu0 0.0
        %1132 = vmatprep.subr.mxu0 0.0
        %1133 = vmatpush1.xpose.msra.mxu0 %v1100
        %1134 = vmatprep.subr.mxu0 0.0
        %1135 = vmatpush2.xpose.msra.mxu0 0.0
        %1136 = vmatprep.subr.mxu0 0.0
        %1137 = vmatpush2.xpose.msra.mxu0 0.0
        %1138 = vmatprep.subr.mxu0 0.0
        %1139 = vmatpush2.xpose.msra.mxu0 0.0
        %1140 = vmatprep.subr.mxu0 0.0
        %1141 = vmatpush2.xpose.msra.mxu0 0.0
        %1142 = vmatprep.subr.mxu0 0.0
        %1143 = vmatpush2.xpose.msra.mxu0 0.0
        %1144 = vmatprep.subr.mxu0 0.0
        %1145 = vmatpush2.xpose.msra.mxu0 0.0
        %1146 = vmatprep.subr.mxu0 0.0
        %1147 = vmatpush2.xpose.msra.mxu0 0.0
        %1148 = vmatprep.subr.mxu0 0.0
        %1149 = vmatpush2.xpose.msra.mxu0 0.0
        %1150 = vmatprep.subr.mxu0 0.0
        %1151 = vmatpush2.xpose.msra.mxu0 0.0
        %1152 = vmatprep.subr.mxu0 0.0
        %1153 = vmatpush2.xpose.msra.mxu0 0.0
        %1154 = vmatprep.subr.mxu0 0.0
        %1155 = vmatpush2.xpose.msra.mxu0 0.0
        %1156 = vmatprep.subr.mxu0 0.0
        %1157 = vmatpush2.xpose.msra.mxu0 0.0
        %1158 = vmatprep.subr.mxu0 0.0
        %1159 = vmatpush2.xpose.msra.mxu0 0.0
        %1160 = vmatprep.subr.mxu0 0.0
        %1161 = vmatpush2.xpose.msra.mxu0 0.0
        %1162 = vmatprep.subr.mxu0 0.0
        %1163 = vmatpush2.xpose.msra.mxu0 0.0
        %1164 = vmatprep.subr.mxu0 0.0
        %1165 = vmatpush2.xpose.msra.mxu0 0.0
        %1166 = vmatprep.mubr.f32.mxu0 0.0
        %1167 = vmatmul.mubr.f32.gmra.mxu0 %v1098
        %v1168 = vpop.f32.mrf.mxu0
        %v1169 = vadd.f32 0.0, %v1168
        %v1170 = vpop.f32.mrf.mxu0
        %1171 = vdwg.mxu0
        %v1172 = vmul.f32 %v1169, 0.35355338
        %v1173 = vadd.f32 %v1172, %v880
        %v1174 = vsel %vm884, %v1173, -inf
        %1175 = vmax.xlane.f32.xlu0 %v1174
        %v1176 = vpop.xlane.xlu0 %1175
        %v1177 = vsub.f32 %v1173, %v1176
        %v1178 = vmul.f32 %v1177, 1.442695
        %v1179 = vpow.pop %v1178
        %v1180 = vsel %vm884, %v1179, 0.0
        %1181 = vadd.xlane.f32.xlu0 %v1180
        %v1182 = vpop.xlane.xlu0 %1181
        %v1183 = vrcp.pop %v1182
        %v1184 = vmul.f32 %v1179, %v1183
        %v1185 = vmul.f32 %v920, %v1184
        %v1186 = vadd.f32 %v1185, %v928
        %s1187 = scalar_lea.vmem %s597, 8 [#allocation17]
        %1188 = vst.msk [vmem:[%s1187] sm:$0xff] %vm884, %v1186
        %1190 = vrot.lane.b32.xlu0 %v876, 120
        %v1191 = vpop.permute.xlu0 %1190
        %v1194 = vsel %vm884, %v1186, 0
        %1196 = vmatprep.subr.mxu0 0.0
        %1197 = vmatpush1.msra.mxu0 0.0
        %1198 = vmatprep.subr.mxu0 0.0
        %1199 = vmatpush1.msra.mxu0 0.0
        %1200 = vmatprep.subr.mxu0 0.0
        %1201 = vmatpush1.msra.mxu0 0.0
        %1202 = vmatprep.subr.mxu0 0.0
        %1203 = vmatpush1.msra.mxu0 0.0
        %1204 = vmatprep.subr.mxu0 0.0
        %1205 = vmatpush1.msra.mxu0 0.0
        %1206 = vmatprep.subr.mxu0 0.0
        %1207 = vmatpush1.msra.mxu0 0.0
        %1208 = vmatprep.subr.mxu0 0.0
        %1209 = vmatpush1.msra.mxu0 0.0
        %1210 = vmatprep.subr.mxu0 0.0
        %1211 = vmatpush1.msra.mxu0 0.0
        %1212 = vmatprep.subr.mxu0 0.0
        %1213 = vmatpush1.msra.mxu0 0.0
        %1214 = vmatprep.subr.mxu0 0.0
        %1215 = vmatpush1.msra.mxu0 0.0
        %1216 = vmatprep.subr.mxu0 0.0
        %1217 = vmatpush1.msra.mxu0 0.0
        %1218 = vmatprep.subr.mxu0 0.0
        %1219 = vmatpush1.msra.mxu0 0.0
        %1220 = vmatprep.subr.mxu0 0.0
        %1221 = vmatpush1.msra.mxu0 0.0
        %1222 = vmatprep.subr.mxu0 0.0
        %1223 = vmatpush1.msra.mxu0 0.0
        %1224 = vmatprep.subr.mxu0 0.0
        %1225 = vmatpush1.msra.mxu0 0.0
        %1226 = vmatprep.subr.mxu0 0.0
        %1227 = vmatpush1.msra.mxu0 %v1191
        %1228 = vmatprep.subr.mxu0 0.0
        %1229 = vmatpush2.msra.mxu0 0.0
        %1230 = vmatprep.subr.mxu0 0.0
        %1231 = vmatpush2.msra.mxu0 0.0
        %1232 = vmatprep.subr.mxu0 0.0
        %1233 = vmatpush2.msra.mxu0 0.0
        %1234 = vmatprep.subr.mxu0 0.0
        %1235 = vmatpush2.msra.mxu0 0.0
        %1236 = vmatprep.subr.mxu0 0.0
        %1237 = vmatpush2.msra.mxu0 0.0
        %1238 = vmatprep.subr.mxu0 0.0
        %1239 = vmatpush2.msra.mxu0 0.0
        %1240 = vmatprep.subr.mxu0 0.0
        %1241 = vmatpush2.msra.mxu0 0.0
        %1242 = vmatprep.subr.mxu0 0.0
        %1243 = vmatpush2.msra.mxu0 0.0
        %1244 = vmatprep.subr.mxu0 0.0
        %1245 = vmatpush2.msra.mxu0 0.0
        %1246 = vmatprep.subr.mxu0 0.0
        %1247 = vmatpush2.msra.mxu0 0.0
        %1248 = vmatprep.subr.mxu0 0.0
        %1249 = vmatpush2.msra.mxu0 0.0
        %1250 = vmatprep.subr.mxu0 0.0
        %1251 = vmatpush2.msra.mxu0 0.0
        %1252 = vmatprep.subr.mxu0 0.0
        %1253 = vmatpush2.msra.mxu0 0.0
        %1254 = vmatprep.subr.mxu0 0.0
        %1255 = vmatpush2.msra.mxu0 0.0
        %1256 = vmatprep.subr.mxu0 0.0
        %1257 = vmatpush2.msra.mxu0 0.0
        %1258 = vmatprep.subr.mxu0 0.0
        %1259 = vmatpush2.msra.mxu0 0.0
        %1260 = vmatprep.mubr.f32.mxu0 0.0
        %1261 = vmatmul.mubr.f32.gmra.mxu0 %v1194
        %v1262 = vpop.f32.mrf.mxu0
        %v1263 = vadd.f32 0.0, %v1262
        %v1264 = vpop.f32.mrf.mxu0
        %1265 = vdwg.mxu0
        %1266 = vrot.lane.b32.xlu0 %v872, 112
        %v1267 = vpop.permute.xlu0 %1266
        %1268 = vrot.lane.b32.xlu0 %v875, 112
        %v1269 = vpop.permute.xlu0 %1268
        %v1270 = vsel %vm884, %v1267, 0
        %v1272 = vsel %vm884, %v1269, 0
        %1274 = vmatprep.subr.mxu0 0.0
        %1275 = vmatpush1.xpose.msra.mxu0 0.0
        %1276 = vmatprep.subr.mxu0 0.0
        %1277 = vmatpush1.xpose.msra.mxu0 0.0
        %1278 = vmatprep.subr.mxu0 0.0
        %1279 = vmatpush1.xpose.msra.mxu0 0.0
        %1280 = vmatprep.subr.mxu0 0.0
        %1281 = vmatpush1.xpose.msra.mxu0 0.0
        %1282 = vmatprep.subr.mxu0 0.0
        %1283 = vmatpush1.xpose.msra.mxu0 0.0
        %1284 = vmatprep.subr.mxu0 0.0
        %1285 = vmatpush1.xpose.msra.mxu0 0.0
        %1286 = vmatprep.subr.mxu0 0.0
        %1287 = vmatpush1.xpose.msra.mxu0 0.0
        %1288 = vmatprep.subr.mxu0 0.0
        %1289 = vmatpush1.xpose.msra.mxu0 0.0
        %1290 = vmatprep.subr.mxu0 0.0
        %1291 = vmatpush1.xpose.msra.mxu0 0.0
        %1292 = vmatprep.subr.mxu0 0.0
        %1293 = vmatpush1.xpose.msra.mxu0 0.0
        %1294 = vmatprep.subr.mxu0 0.0
        %1295 = vmatpush1.xpose.msra.mxu0 0.0
        %1296 = vmatprep.subr.mxu0 0.0
        %1297 = vmatpush1.xpose.msra.mxu0 0.0
        %1298 = vmatprep.subr.mxu0 0.0
        %1299 = vmatpush1.xpose.msra.mxu0 0.0
        %1300 = vmatprep.subr.mxu0 0.0
        %1301 = vmatpush1.xpose.msra.mxu0 0.0
        %1302 = vmatprep.subr.mxu0 0.0
        %1303 = vmatpush1.xpose.msra.mxu0 0.0
        %1304 = vmatprep.subr.mxu0 0.0
        %1305 = vmatpush1.xpose.msra.mxu0 %v1272
        %1306 = vmatprep.subr.mxu0 0.0
        %1307 = vmatpush2.xpose.msra.mxu0 0.0
        %1308 = vmatprep.subr.mxu0 0.0
        %1309 = vmatpush2.xpose.msra.mxu0 0.0
        %1310 = vmatprep.subr.mxu0 0.0
        %1311 = vmatpush2.xpose.msra.mxu0 0.0
        %1312 = vmatprep.subr.mxu0 0.0
        %1313 = vmatpush2.xpose.msra.mxu0 0.0
        %1314 = vmatprep.subr.mxu0 0.0
        %1315 = vmatpush2.xpose.msra.mxu0 0.0
        %1316 = vmatprep.subr.mxu0 0.0
        %1317 = vmatpush2.xpose.msra.mxu0 0.0
        %1318 = vmatprep.subr.mxu0 0.0
        %1319 = vmatpush2.xpose.msra.mxu0 0.0
        %1320 = vmatprep.subr.mxu0 0.0
        %1321 = vmatpush2.xpose.msra.mxu0 0.0
        %1322 = vmatprep.subr.mxu0 0.0
        %1323 = vmatpush2.xpose.msra.mxu0 0.0
        %1324 = vmatprep.subr.mxu0 0.0
        %1325 = vmatpush2.xpose.msra.mxu0 0.0
        %1326 = vmatprep.subr.mxu0 0.0
        %1327 = vmatpush2.xpose.msra.mxu0 0.0
        %1328 = vmatprep.subr.mxu0 0.0
        %1329 = vmatpush2.xpose.msra.mxu0 0.0
        %1330 = vmatprep.subr.mxu0 0.0
        %1331 = vmatpush2.xpose.msra.mxu0 0.0
        %1332 = vmatprep.subr.mxu0 0.0
        %1333 = vmatpush2.xpose.msra.mxu0 0.0
        %1334 = vmatprep.subr.mxu0 0.0
        %1335 = vmatpush2.xpose.msra.mxu0 0.0
        %1336 = vmatprep.subr.mxu0 0.0
        %1337 = vmatpush2.xpose.msra.mxu0 0.0
        %1338 = vmatprep.mubr.f32.mxu0 0.0
        %1339 = vmatmul.mubr.f32.gmra.mxu0 %v1270
        %v1340 = vpop.f32.mrf.mxu0
        %v1341 = vadd.f32 0.0, %v1340
        %v1342 = vpop.f32.mrf.mxu0
        %1343 = vdwg.mxu0
        %v1344 = vmul.f32 %v1341, 0.35355338
        %v1345 = vadd.f32 %v1344, %v880
        %v1346 = vsel %vm884, %v1345, -inf
        %1347 = vmax.xlane.f32.xlu0 %v1346
        %v1348 = vpop.xlane.xlu0 %1347
        %v1349 = vsub.f32 %v1345, %v1348
        %v1350 = vmul.f32 %v1349, 1.442695
        %v1351 = vpow.pop %v1350
        %v1352 = vsel %vm884, %v1351, 0.0
        %1353 = vadd.xlane.f32.xlu0 %v1352
        %v1354 = vpop.xlane.xlu0 %1353
        %v1355 = vrcp.pop %v1354
        %v1356 = vmul.f32 %v1351, %v1355
        %v1357 = vmul.f32 %v920, %v1356
        %v1358 = vadd.f32 %v1357, %v928
        %s1359 = scalar_lea.vmem %s597, 16 [#allocation17]
        %1360 = vst.msk [vmem:[%s1359] sm:$0xff] %vm884, %v1358
        %1361 = vrot.lane.b32.xlu0 %v876, 112
        %v1362 = vpop.permute.xlu0 %1361
        %v1365 = vsel %vm884, %v1358, 0
        %1367 = vmatprep.subr.mxu0 0.0
        %1368 = vmatpush1.msra.mxu0 0.0
        %1369 = vmatprep.subr.mxu0 0.0
        %1370 = vmatpush1.msra.mxu0 0.0
        %1371 = vmatprep.subr.mxu0 0.0
        %1372 = vmatpush1.msra.mxu0 0.0
        %1373 = vmatprep.subr.mxu0 0.0
        %1374 = vmatpush1.msra.mxu0 0.0
        %1375 = vmatprep.subr.mxu0 0.0
        %1376 = vmatpush1.msra.mxu0 0.0
        %1377 = vmatprep.subr.mxu0 0.0
        %1378 = vmatpush1.msra.mxu0 0.0
        %1379 = vmatprep.subr.mxu0 0.0
        %1380 = vmatpush1.msra.mxu0 0.0
        %1381 = vmatprep.subr.mxu0 0.0
        %1382 = vmatpush1.msra.mxu0 0.0
        %1383 = vmatprep.subr.mxu0 0.0
        %1384 = vmatpush1.msra.mxu0 0.0
        %1385 = vmatprep.subr.mxu0 0.0
        %1386 = vmatpush1.msra.mxu0 0.0
        %1387 = vmatprep.subr.mxu0 0.0
        %1388 = vmatpush1.msra.mxu0 0.0
        %1389 = vmatprep.subr.mxu0 0.0
        %1390 = vmatpush1.msra.mxu0 0.0
        %1391 = vmatprep.subr.mxu0 0.0
        %1392 = vmatpush1.msra.mxu0 0.0
        %1393 = vmatprep.subr.mxu0 0.0
        %1394 = vmatpush1.msra.mxu0 0.0
        %1395 = vmatprep.subr.mxu0 0.0
        %1396 = vmatpush1.msra.mxu0 0.0
        %1397 = vmatprep.subr.mxu0 0.0
        %1398 = vmatpush1.msra.mxu0 %v1362
        %1399 = vmatprep.subr.mxu0 0.0
        %1400 = vmatpush2.msra.mxu0 0.0
        %1401 = vmatprep.subr.mxu0 0.0
        %1402 = vmatpush2.msra.mxu0 0.0
        %1403 = vmatprep.subr.mxu0 0.0
        %1404 = vmatpush2.msra.mxu0 0.0
        %1405 = vmatprep.subr.mxu0 0.0
        %1406 = vmatpush2.msra.mxu0 0.0
        %1407 = vmatprep.subr.mxu0 0.0
        %1408 = vmatpush2.msra.mxu0 0.0
        %1409 = vmatprep.subr.mxu0 0.0
        %1410 = vmatpush2.msra.mxu0 0.0
        %1411 = vmatprep.subr.mxu0 0.0
        %1412 = vmatpush2.msra.mxu0 0.0
        %1413 = vmatprep.subr.mxu0 0.0
        %1414 = vmatpush2.msra.mxu0 0.0
        %1415 = vmatprep.subr.mxu0 0.0
        %1416 = vmatpush2.msra.mxu0 0.0
        %1417 = vmatprep.subr.mxu0 0.0
        %1418 = vmatpush2.msra.mxu0 0.0
        %1419 = vmatprep.subr.mxu0 0.0
        %1420 = vmatpush2.msra.mxu0 0.0
        %1421 = vmatprep.subr.mxu0 0.0
        %1422 = vmatpush2.msra.mxu0 0.0
        %1423 = vmatprep.subr.mxu0 0.0
        %1424 = vmatpush2.msra.mxu0 0.0
        %1425 = vmatprep.subr.mxu0 0.0
        %1426 = vmatpush2.msra.mxu0 0.0
        %1427 = vmatprep.subr.mxu0 0.0
        %1428 = vmatpush2.msra.mxu0 0.0
        %1429 = vmatprep.subr.mxu0 0.0
        %1430 = vmatpush2.msra.mxu0 0.0
        %1431 = vmatprep.mubr.f32.mxu0 0.0
        %1432 = vmatmul.mubr.f32.gmra.mxu0 %v1365
        %v1433 = vpop.f32.mrf.mxu0
        %v1434 = vadd.f32 0.0, %v1433
        %v1435 = vpop.f32.mrf.mxu0
        %1436 = vdwg.mxu0
        %1437 = vrot.lane.b32.xlu0 %v872, 104
        %v1438 = vpop.permute.xlu0 %1437
        %1439 = vrot.lane.b32.xlu0 %v875, 104
        %v1440 = vpop.permute.xlu0 %1439
        %v1441 = vsel %vm884, %v1438, 0
        %v1443 = vsel %vm884, %v1440, 0
        %1445 = vmatprep.subr.mxu0 0.0
        %1446 = vmatpush1.xpose.msra.mxu0 0.0
        %1447 = vmatprep.subr.mxu0 0.0
        %1448 = vmatpush1.xpose.msra.mxu0 0.0
        %1449 = vmatprep.subr.mxu0 0.0
        %1450 = vmatpush1.xpose.msra.mxu0 0.0
        %1451 = vmatprep.subr.mxu0 0.0
        %1452 = vmatpush1.xpose.msra.mxu0 0.0
        %1453 = vmatprep.subr.mxu0 0.0
        %1454 = vmatpush1.xpose.msra.mxu0 0.0
        %1455 = vmatprep.subr.mxu0 0.0
        %1456 = vmatpush1.xpose.msra.mxu0 0.0
        %1457 = vmatprep.subr.mxu0 0.0
        %1458 = vmatpush1.xpose.msra.mxu0 0.0
        %1459 = vmatprep.subr.mxu0 0.0
        %1460 = vmatpush1.xpose.msra.mxu0 0.0
        %1461 = vmatprep.subr.mxu0 0.0
        %1462 = vmatpush1.xpose.msra.mxu0 0.0
        %1463 = vmatprep.subr.mxu0 0.0
        %1464 = vmatpush1.xpose.msra.mxu0 0.0
        %1465 = vmatprep.subr.mxu0 0.0
        %1466 = vmatpush1.xpose.msra.mxu0 0.0
        %1467 = vmatprep.subr.mxu0 0.0
        %1468 = vmatpush1.xpose.msra.mxu0 0.0
        %1469 = vmatprep.subr.mxu0 0.0
        %1470 = vmatpush1.xpose.msra.mxu0 0.0
        %1471 = vmatprep.subr.mxu0 0.0
        %1472 = vmatpush1.xpose.msra.mxu0 0.0
        %1473 = vmatprep.subr.mxu0 0.0
        %1474 = vmatpush1.xpose.msra.mxu0 0.0
        %1475 = vmatprep.subr.mxu0 0.0
        %1476 = vmatpush1.xpose.msra.mxu0 %v1443
        %1477 = vmatprep.subr.mxu0 0.0
        %1478 = vmatpush2.xpose.msra.mxu0 0.0
        %1479 = vmatprep.subr.mxu0 0.0
        %1480 = vmatpush2.xpose.msra.mxu0 0.0
        %1481 = vmatprep.subr.mxu0 0.0
        %1482 = vmatpush2.xpose.msra.mxu0 0.0
        %1483 = vmatprep.subr.mxu0 0.0
        %1484 = vmatpush2.xpose.msra.mxu0 0.0
        %1485 = vmatprep.subr.mxu0 0.0
        %1486 = vmatpush2.xpose.msra.mxu0 0.0
        %1487 = vmatprep.subr.mxu0 0.0
        %1488 = vmatpush2.xpose.msra.mxu0 0.0
        %1489 = vmatprep.subr.mxu0 0.0
        %1490 = vmatpush2.xpose.msra.mxu0 0.0
        %1491 = vmatprep.subr.mxu0 0.0
        %1492 = vmatpush2.xpose.msra.mxu0 0.0
        %1493 = vmatprep.subr.mxu0 0.0
        %1494 = vmatpush2.xpose.msra.mxu0 0.0
        %1495 = vmatprep.subr.mxu0 0.0
        %1496 = vmatpush2.xpose.msra.mxu0 0.0
        %1497 = vmatprep.subr.mxu0 0.0
        %1498 = vmatpush2.xpose.msra.mxu0 0.0
        %1499 = vmatprep.subr.mxu0 0.0
        %1500 = vmatpush2.xpose.msra.mxu0 0.0
        %1501 = vmatprep.subr.mxu0 0.0
        %1502 = vmatpush2.xpose.msra.mxu0 0.0
        %1503 = vmatprep.subr.mxu0 0.0
        %1504 = vmatpush2.xpose.msra.mxu0 0.0
        %1505 = vmatprep.subr.mxu0 0.0
        %1506 = vmatpush2.xpose.msra.mxu0 0.0
        %1507 = vmatprep.subr.mxu0 0.0
        %1508 = vmatpush2.xpose.msra.mxu0 0.0
        %1509 = vmatprep.mubr.f32.mxu0 0.0
        %1510 = vmatmul.mubr.f32.gmra.mxu0 %v1441
        %v1511 = vpop.f32.mrf.mxu0
        %v1512 = vadd.f32 0.0, %v1511
        %v1513 = vpop.f32.mrf.mxu0
        %1514 = vdwg.mxu0
        %v1515 = vmul.f32 %v1512, 0.35355338
        %v1516 = vadd.f32 %v1515, %v880
        %v1517 = vsel %vm884, %v1516, -inf
        %1518 = vmax.xlane.f32.xlu0 %v1517
        %v1519 = vpop.xlane.xlu0 %1518
        %v1520 = vsub.f32 %v1516, %v1519
        %v1521 = vmul.f32 %v1520, 1.442695
        %v1522 = vpow.pop %v1521
        %v1523 = vsel %vm884, %v1522, 0.0
        %1524 = vadd.xlane.f32.xlu0 %v1523
        %v1525 = vpop.xlane.xlu0 %1524
        %v1526 = vrcp.pop %v1525
        %v1527 = vmul.f32 %v1522, %v1526
        %v1528 = vmul.f32 %v920, %v1527
        %v1529 = vadd.f32 %v1528, %v928
        %s1530 = scalar_lea.vmem %s597, 24 [#allocation17]
        %1531 = vst.msk [vmem:[%s1530] sm:$0xff] %vm884, %v1529
        %1532 = vrot.lane.b32.xlu0 %v876, 104
        %v1533 = vpop.permute.xlu0 %1532
        %v1536 = vsel %vm884, %v1529, 0
        %1538 = vmatprep.subr.mxu0 0.0
        %1539 = vmatpush1.msra.mxu0 0.0
        %1540 = vmatprep.subr.mxu0 0.0
        %1541 = vmatpush1.msra.mxu0 0.0
        %1542 = vmatprep.subr.mxu0 0.0
        %1543 = vmatpush1.msra.mxu0 0.0
        %1544 = vmatprep.subr.mxu0 0.0
        %1545 = vmatpush1.msra.mxu0 0.0
        %1546 = vmatprep.subr.mxu0 0.0
        %1547 = vmatpush1.msra.mxu0 0.0
        %1548 = vmatprep.subr.mxu0 0.0
        %1549 = vmatpush1.msra.mxu0 0.0
        %1550 = vmatprep.subr.mxu0 0.0
        %1551 = vmatpush1.msra.mxu0 0.0
        %1552 = vmatprep.subr.mxu0 0.0
        %1553 = vmatpush1.msra.mxu0 0.0
        %1554 = vmatprep.subr.mxu0 0.0
        %1555 = vmatpush1.msra.mxu0 0.0
        %1556 = vmatprep.subr.mxu0 0.0
        %1557 = vmatpush1.msra.mxu0 0.0
        %1558 = vmatprep.subr.mxu0 0.0
        %1559 = vmatpush1.msra.mxu0 0.0
        %1560 = vmatprep.subr.mxu0 0.0
        %1561 = vmatpush1.msra.mxu0 0.0
        %1562 = vmatprep.subr.mxu0 0.0
        %1563 = vmatpush1.msra.mxu0 0.0
        %1564 = vmatprep.subr.mxu0 0.0
        %1565 = vmatpush1.msra.mxu0 0.0
        %1566 = vmatprep.subr.mxu0 0.0
        %1567 = vmatpush1.msra.mxu0 0.0
        %1568 = vmatprep.subr.mxu0 0.0
        %1569 = vmatpush1.msra.mxu0 %v1533
        %1570 = vmatprep.subr.mxu0 0.0
        %1571 = vmatpush2.msra.mxu0 0.0
        %1572 = vmatprep.subr.mxu0 0.0
        %1573 = vmatpush2.msra.mxu0 0.0
        %1574 = vmatprep.subr.mxu0 0.0
        %1575 = vmatpush2.msra.mxu0 0.0
        %1576 = vmatprep.subr.mxu0 0.0
        %1577 = vmatpush2.msra.mxu0 0.0
        %1578 = vmatprep.subr.mxu0 0.0
        %1579 = vmatpush2.msra.mxu0 0.0
        %1580 = vmatprep.subr.mxu0 0.0
        %1581 = vmatpush2.msra.mxu0 0.0
        %1582 = vmatprep.subr.mxu0 0.0
        %1583 = vmatpush2.msra.mxu0 0.0
        %1584 = vmatprep.subr.mxu0 0.0
        %1585 = vmatpush2.msra.mxu0 0.0
        %1586 = vmatprep.subr.mxu0 0.0
        %1587 = vmatpush2.msra.mxu0 0.0
        %1588 = vmatprep.subr.mxu0 0.0
        %1589 = vmatpush2.msra.mxu0 0.0
        %1590 = vmatprep.subr.mxu0 0.0
        %1591 = vmatpush2.msra.mxu0 0.0
        %1592 = vmatprep.subr.mxu0 0.0
        %1593 = vmatpush2.msra.mxu0 0.0
        %1594 = vmatprep.subr.mxu0 0.0
        %1595 = vmatpush2.msra.mxu0 0.0
        %1596 = vmatprep.subr.mxu0 0.0
        %1597 = vmatpush2.msra.mxu0 0.0
        %1598 = vmatprep.subr.mxu0 0.0
        %1599 = vmatpush2.msra.mxu0 0.0
        %1600 = vmatprep.subr.mxu0 0.0
        %1601 = vmatpush2.msra.mxu0 0.0
        %1602 = vmatprep.mubr.f32.mxu0 0.0
        %1603 = vmatmul.mubr.f32.gmra.mxu0 %v1536
        %v1604 = vpop.f32.mrf.mxu0
        %v1605 = vadd.f32 0.0, %v1604
        %v1606 = vpop.f32.mrf.mxu0
        %1607 = vdwg.mxu0
        %1609 = vrot.lane.b32.xlu0 %v1263, 8
        %v1610 = vpop.permute.xlu0 %1609
        %1613 = vrot.lane.b32.xlu0 %v1434, 16
        %v1614 = vpop.permute.xlu0 %1613
        %1617 = vrot.lane.b32.xlu0 %v1605, 24
        %v1618 = vpop.permute.xlu0 %1617
        %v1620 = vsel %vm884, %v1091, %v1610
        %vm1621 = vcmask 130048
        %v1622 = vsel %vm1621, %v1620, %v1614
        %vm1623 = vcmask 195584
        %v1624 = vsel %vm1623, %v1622, %v1618
        %1625 = vst.msk [vmem:[%s590] sm:$0xff] %vm801, %v1624
        %s1626 = sand.u32 %s285, 1
        %s1627 = scalar_lea.sflag [#allocation6], %s1626
        %s1628 = sand.u32 %s285, 1
        %s1629 = smul.addr %s1628, 8
        %s1630 = scalar_lea.vmem [#allocation16], %s1629
        %s1631 = sand.u32 %s313, 1
        %s1632 = scalar_lea.sflag [#allocation18], %s1631
        %s1633 = sand.u32 %s313, 1
        %s1634 = smul.addr %s1633, 32
        %s1635 = scalar_lea.vmem [#allocation17], %s1634
        // Predicated region
        $region89: #{tpu_custom_call.1} parent=55 // pred_check
          %p1636 = pneg %p295
        $region90: #{tpu_custom_call.1} parent=55 // pred_check_branch
          %1638 = sbr.rel (%p1636) target = $region92
        $region91: #{tpu_custom_call.1} parent=55 // pred_region
          %s1640 = ssub.s32 128, 128
          %1641 = vsyncadd %s1627, %s1640
          %s1642 = sadd.s32 %s41, %s40
          %s1643 = smul.addr %s1642, 128
          %s1644 = scalar_lea.hbm %s9, %s1643
          %s1646 = sshll.u32 %s1630, 4
          %s1647 = int_to_ptr.vmem [resolvable:$true] %s1646
          %1649 = dma.vmem_to_hbm [thread:$0]  %s1647, 128, %s1644, %s1627
        $region92: #{tpu_custom_call.1} parent=55 // pred_fallthru
          _
        // Predicated region
        $region93: #{tpu_custom_call.1} parent=55 // pred_check
          %p1650 = pneg %p323
        $region94: #{tpu_custom_call.1} parent=55 // pred_check_branch
          %1652 = sbr.rel (%p1650) target = $region96
        $region95: #{tpu_custom_call.1} parent=55 // pred_region
          %s1654 = ssub.s32 512, 512
          %1655 = vsyncadd %s1632, %s1654
          %s1656 = smul.addr %s40, 4
          %s1657 = sadd.s32 %s41, %s1656
          %s1658 = smul.addr %s1657, 128
          %s1659 = scalar_lea.hbm %s10, %s1658
          %s1660 = sshll.u32 %s1635, 4
          %s1661 = int_to_ptr.vmem [resolvable:$true] %s1660
          %1666 = dma.vmem_to_hbm [thread:$0]  %s1661, 512, %s1659, %s1632, 128, 128, 8
        $region96: #{tpu_custom_call.1} parent=55 // pred_fallthru
          _
      $region56: #{tpu_custom_call.1} parent=5 // pred_fallthru
        _
      %p1667 = scmp.le.s32.totalorder 2, %s31
      // Predicated region
      $region97: #{tpu_custom_call.1} parent=5 // pred_check
        %p1668 = pneg %p1667
      $region98: #{tpu_custom_call.1} parent=5 // pred_check_branch
        %1670 = sbr.rel (%p1668) target = $region100
      $region99: #{tpu_custom_call.1} parent=5 // pred_region
        %s1671 = ssub.s32 %s31, 2
        // Predicated region
        $region101: #{tpu_custom_call.1} parent=99 // pred_check
          %p1672 = pneg %p301
        $region102: #{tpu_custom_call.1} parent=99 // pred_check_branch
          %1674 = sbr.rel (%p1672) target = $region104
        $region103: #{tpu_custom_call.1} parent=99 // pred_region
          %s1675 = sand.u32 %s286, 1
          %s1676 = scalar_lea.sflag [#allocation6], %s1675
          %s1677 = sand.u32 %s286, 1
          %s1678 = smul.addr %s1677, 8
          %s1679 = scalar_lea.vmem [#allocation16], %s1678
          %1680 = dma.done %s1676, 128
        $region104: #{tpu_custom_call.1} parent=99 // pred_fallthru
          _
        // Predicated region
        $region105: #{tpu_custom_call.1} parent=99 // pred_check
          %p1681 = pneg %p329
        $region106: #{tpu_custom_call.1} parent=99 // pred_check_branch
          %1683 = sbr.rel (%p1681) target = $region108
        $region107: #{tpu_custom_call.1} parent=99 // pred_region
          %s1684 = sand.u32 %s314, 1
          %s1685 = scalar_lea.sflag [#allocation18], %s1684
          %s1686 = sand.u32 %s314, 1
          %s1687 = smul.addr %s1686, 32
          %s1688 = scalar_lea.vmem [#allocation17], %s1687
          %1689 = dma.done %s1685, 512
        $region108: #{tpu_custom_call.1} parent=99 // pred_fallthru
          _
      $region100: #{tpu_custom_call.1} parent=5 // pred_fallthru
        _
    $region6: #{tpu_custom_call.1} parent=1 // loop_footer
      %s35 = sadd.s32 1, %s31
    $region7: #{tpu_custom_call.1} parent=1 // loop_footer_branch
      %30 = sbr.rel target = $region3
    $region8: #{tpu_custom_call.1} parent=1 // loop_exit
      _
    %1690 = vsyncpa [#allocation5], 1
    %s1691 = scalar_lea.sflag [#allocation5], 1
    %1692 = vsyncpa %s1691, 1
    %1693 = vsyncpa [#allocation10], 1
    %s1694 = scalar_lea.sflag [#allocation10], 1
    %1695 = vsyncpa %s1694, 1
    %1696 = vsyncpa [#allocation13], 1
    %1697 = vsyncpa [#allocation6], 1
    %s1698 = scalar_lea.sflag [#allocation6], 1
    %1699 = vsyncpa %s1698, 1
    %1700 = vsyncpa [#allocation18], 1
    %s1701 = scalar_lea.sflag [#allocation18], 1
    %1702 = vsyncpa %s1701, 1
    %1703 = vsyncpa [#allocation7], 1
    %s1704 = scalar_lea.sflag [#allocation7], 1
    %1705 = vsyncpa %s1704, 1

</llo_original>
